<compile_context>
chip_gen: v7x
topology: tpu7x:2x2x1
jax: 0.10.0
libtpu: 0.0.40
codegen_flags: <defaults>
</compile_context>

<pallas_src>
import functools

import jax
import jax.numpy as jnp
from jax import lax
from jax.experimental import pallas as pl
from jax.experimental.pallas import tpu as pltpu


def _round_up(v, m):
    return (v + m - 1) // m * m


# ----------------------------------------------------------------------------
# Kernel A: fused [theta|phi] conv-as-matmul + noise/softplus fusion +
# per-tile partial BatchNorm statistics + 2x2 max/min pre-pooling.
# ----------------------------------------------------------------------------
def _conv_fuse_pool_kernel(p_ref, w_ref, n_ref,
                           gmax_ref, gmin_ref, sum_ref, ssq_ref,
                           *, cpad, gwin):
    # Single bf16 MXU matmul, f32 accumulation: (tm, Kpad) x (Kpad, 2*Cpad).
    acc = jnp.dot(p_ref[...], w_ref[...], preferred_element_type=jnp.float32)
    theta = acc[:, :cpad]            # lane-aligned slices (cpad % 128 == 0)
    phi = acc[:, cpad:]

    z = phi + n_ref[...].astype(jnp.float32)
    # torch.nn.functional.softplus (beta=1, threshold=20), f32 elementwise.
    sp = jnp.where(z > 20.0, z, jnp.log1p(jnp.exp(jnp.minimum(z, 20.0))))
    f = theta * sp

    # Per-tile partial BN sums (reduced in the wrapper) -> grid axis stays
    # "parallel".  Padded rows contribute exactly 0 (bias lives in the ones
    # column, which is 0 for padded rows).
    sum_ref[...] = jnp.sum(f, axis=0, keepdims=True)[None]
    ssq_ref[...] = jnp.sum(f * f, axis=0, keepdims=True)[None]

    # 2x2 max-pool pre-reduction.  Rows [t*gwin:(t+1)*gwin) of the tile are
    # tap t (t = 0..3) of the same gwin pooling windows, so the pool is four
    # static sublane slices + elementwise max/min.  Min is kept for channels
    # with a negative BatchNorm scale.  Stored bf16 -> 4x less HBM traffic.
    f0 = f[0 * gwin:1 * gwin]
    f1 = f[1 * gwin:2 * gwin]
    f2 = f[2 * gwin:3 * gwin]
    f3 = f[3 * gwin:4 * gwin]
    gmax_ref[...] = jnp.maximum(jnp.maximum(f0, f1),
                                jnp.maximum(f2, f3)).astype(gmax_ref.dtype)
    gmin_ref[...] = jnp.minimum(jnp.minimum(f0, f1),
                                jnp.minimum(f2, f3)).astype(gmin_ref.dtype)


# ----------------------------------------------------------------------------
# Kernel B: BN affine + ReLU on the pre-pooled window extrema.
#   max over window of (scale*f + shift) = scale*max(f)+shift   if scale >= 0
#                                        = scale*min(f)+shift   otherwise
# implemented branch-free as gmax*max(scale,0) + gmin*min(scale,0) + shift.
# ----------------------------------------------------------------------------
def _bn_relu_kernel(gmax_ref, gmin_ref, scale_ref, shift_ref, o_ref):
    scale = scale_ref[...]                       # (1, Cpad) f32
    shift = shift_ref[...]
    pos = jnp.maximum(scale, 0.0)
    neg = jnp.minimum(scale, 0.0)
    y = (gmax_ref[...].astype(jnp.float32) * pos
         + gmin_ref[...].astype(jnp.float32) * neg + shift)
    o_ref[...] = jnp.maximum(y, 0.0)


# ----------------------------------------------------------------------------
# Wrapper
# ----------------------------------------------------------------------------
def conv_block_forward(x, w_theta, b_theta, w_phi, b_phi, noise_nchw,
                       bn_gamma=None, bn_beta=None, *,
                       padding=1, eps=1e-5, tm=512, tb=512):
    """ConvBlock forward (maml=False path).

    x:            (N, Cin, H, W) f32, NCHW.
    w_theta/phi:  (Cout, Cin, kh, kw) f32 (stride 1, 'same' padding assumed).
    b_theta/phi:  (Cout,) f32.
    noise_nchw:   (N, Cout, H, W) f32 standard-normal noise (the
                  torch.randn(phi_x.size()) draw, supplied by the caller).
    bn_gamma/beta:(Cout,) BatchNorm2d affine params (default 1 / 0).
    Returns (N, Cout, H//2, W//2) f32, NCHW.
    """
    N, Cin, H, W = x.shape
    Cout, _, kh, kw = w_theta.shape
    assert H % 2 == 0 and W % 2 == 0, "2x2/2 max-pool needs even H, W"
    Ho, Wo = H, W
    Hp, Wp = Ho // 2, Wo // 2
    M = N * Ho * Wo                   # conv output pixels
    M2 = N * Hp * Wp                  # pooled output pixels (= M // 4)
    K = Cin * kh * kw

    if bn_gamma is None:
        bn_gamma = jnp.ones((Cout,), jnp.float32)
    if bn_beta is None:
        bn_beta = jnp.zeros((Cout,), jnp.float32)

    bf16 = jnp.bfloat16
    Cpad = _round_up(Cout, 128)       # lane-dense channels
    Kpad = _round_up(K + 1, 128)      # +1: ones column carrying the bias

    # Tile sizes.  tm multiple of 64 so G = tm//4 is 16-sublane aligned (bf16).
    # TODO(synk): re-derive tm per generation for wide-channel configs
    # (v5e 16 MiB scoped-VMEM default, v7x 64 MiB physical VMEM per TC).
    tm = min(tm, 4 * _round_up(M2, 16))
    tm = _round_up(tm, 64)
    G = tm // 4                        # pooling windows per grid step
    M2pad = _round_up(M2, G)
    Mpad = 4 * M2pad
    n_chunks = M2pad // G              # grid size of kernel A

    # -- glue: bf16 im2col in (chunk, tap, window) row order so the 4 taps of
    # each pooling window are 4 static G-row blocks inside a tile. -----------
    xp = jnp.pad(x.astype(bf16),
                 ((0, 0), (0, 0), (padding, padding), (padding, padding)))
    taps = [xp[:, :, ki:ki + Ho, kj:kj + Wo]
            for ki in range(kh) for kj in range(kw)]            # (N,Cin,H,W)
    pw = jnp.stack(taps, axis=0).reshape(kh, kw, N, Cin, Hp, 2, Wp, 2)
    pw = pw.transpose(2, 4, 6, 5, 7, 3, 0, 1).reshape(M2, 4, K)
    pw = jnp.concatenate([pw, jnp.ones((M2, 4, 1), bf16)], axis=2)  # bias col
    pw = jnp.pad(pw, ((0, M2pad - M2), (0, 0), (0, Kpad - K - 1)))
    patches = pw.reshape(n_chunks, G, 4, Kpad).transpose(0, 2, 1, 3)
    patches = patches.reshape(Mpad, Kpad)

    # Fused RHS: lanes [0:Cpad) = theta, [Cpad:2Cpad) = phi; bias in row K.
    w_all = jnp.zeros((Kpad, 2 * Cpad), jnp.float32)
    w_all = w_all.at[:K, :Cout].set(w_theta.reshape(Cout, K).T)
    w_all = w_all.at[:K, Cpad:Cpad + Cout].set(w_phi.reshape(Cout, K).T)
    w_all = w_all.at[K, :Cout].set(b_theta)
    w_all = w_all.at[K, Cpad:Cpad + Cout].set(b_phi)
    w_all = w_all.astype(bf16)

    # Noise, bf16, same (chunk, tap, window) row order as the patches.
    nw = noise_nchw.astype(bf16).transpose(0, 2, 3, 1)
    nw = nw.reshape(N, Hp, 2, Wp, 2, Cout).transpose(0, 1, 3, 2, 4, 5)
    nw = nw.reshape(M2, 4, Cout)
    nw = jnp.pad(nw, ((0, M2pad - M2), (0, 0), (0, Cpad - Cout)))
    noise2d = nw.reshape(n_chunks, G, 4, Cpad).transpose(0, 2, 1, 3)
    noise2d = noise2d.reshape(Mpad, Cpad)

    gmax, gmin, psum, pssq = pl.pallas_call(
        functools.partial(_conv_fuse_pool_kernel, cpad=Cpad, gwin=G),
        out_shape=(
            jax.ShapeDtypeStruct((M2pad, Cpad), bf16),
            jax.ShapeDtypeStruct((M2pad, Cpad), bf16),
            jax.ShapeDtypeStruct((n_chunks, 1, Cpad), jnp.float32),
            jax.ShapeDtypeStruct((n_chunks, 1, Cpad), jnp.float32),
        ),
        grid=(n_chunks,),
        in_specs=[
            pl.BlockSpec((tm, Kpad), lambda i: (i, 0)),
            pl.BlockSpec((Kpad, 2 * Cpad), lambda i: (0, 0)),
            pl.BlockSpec((tm, Cpad), lambda i: (i, 0)),
        ],
        out_specs=(
            pl.BlockSpec((G, Cpad), lambda i: (i, 0)),
            pl.BlockSpec((G, Cpad), lambda i: (i, 0)),
            pl.BlockSpec((1, 1, Cpad), lambda i: (i, 0, 0)),
            pl.BlockSpec((1, 1, Cpad), lambda i: (i, 0, 0)),
        ),
        compiler_params=pltpu.CompilerParams(
            dimension_semantics=("parallel",)),
    )(patches, w_all, noise2d)

    # Tiny per-channel reduction + BN scale/shift precompute (wrapper-side).
    count = float(M)
    mean = jnp.sum(psum, axis=0) / count                       # (1, Cpad)
    var = jnp.maximum(jnp.sum(pssq, axis=0) / count - mean * mean, 0.0)
    gamma2d = jnp.pad(bn_gamma.astype(jnp.float32), (0, Cpad - Cout))
    beta2d = jnp.pad(bn_beta.astype(jnp.float32), (0, Cpad - Cout))
    scale2d = lax.rsqrt(var + eps) * gamma2d.reshape(1, Cpad)
    shift2d = beta2d.reshape(1, Cpad) - mean * scale2d
    # TODO(synk): BatchNorm2d running_mean/running_var updates are not emitted.

    # Kernel B tile: a multiple of G that divides M2pad, so no re-slice /
    # re-pad of the intermediate between the two pallas_calls.
    k = max(1, min(tb, M2pad) // G)
    while n_chunks % k:
        k -= 1
    tb_rows = k * G

    out2d = pl.pallas_call(
        _bn_relu_kernel,
        out_shape=jax.ShapeDtypeStruct((M2pad, Cpad), jnp.float32),
        grid=(M2pad // tb_rows,),
        in_specs=[
            pl.BlockSpec((tb_rows, Cpad), lambda i: (i, 0)),
            pl.BlockSpec((tb_rows, Cpad), lambda i: (i, 0)),
            pl.BlockSpec((1, Cpad), lambda i: (0, 0)),
            pl.BlockSpec((1, Cpad), lambda i: (0, 0)),
        ],
        out_specs=pl.BlockSpec((tb_rows, Cpad), lambda i: (i, 0)),
        compiler_params=pltpu.CompilerParams(
            dimension_semantics=("parallel",)),
    )(gmax, gmin, scale2d, shift2d)

    # back to NCHW (slice off channel / window padding)
    # TODO(synk): skip this transpose if the downstream consumer accepts NHWC.
    return out2d[:M2, :Cout].reshape(N, Hp, Wp, Cout).transpose(0, 3, 1, 2)


# ----------------------------------------------------------------------------
# Pure-JAX reference at matched precision (bf16 convs / noise, f32 elsewhere)
# ----------------------------------------------------------------------------
def _reference(x, w_theta, b_theta, w_phi, b_phi, noise_nchw, gamma, beta,
               eps=1e-5):
    bf16 = jnp.bfloat16
    dn = ('NCHW', 'OIHW', 'NCHW')
    conv = lambda w: lax.conv_general_dilated(
        x.astype(bf16), w.astype(bf16), (1, 1), ((1, 1), (1, 1)),
        dimension_numbers=dn, preferred_element_type=jnp.float32)
    theta = conv(w_theta) + b_theta.astype(bf16).astype(
        jnp.float32)[None, :, None, None]
    phi = conv(w_phi) + b_phi.astype(bf16).astype(
        jnp.float32)[None, :, None, None]
    z = phi + noise_nchw.astype(bf16).astype(jnp.float32)
    sp = jnp.where(z > 20.0, z, jnp.log1p(jnp.exp(jnp.minimum(z, 20.0))))
    f = theta * sp
    mean = f.mean(axis=(0, 2, 3), keepdims=True)
    var = ((f - mean) ** 2).mean(axis=(0, 2, 3), keepdims=True)
    f = (f - mean) * lax.rsqrt(var + eps)
    f = f * gamma[None, :, None, None] + beta[None, :, None, None]
    f = jnp.maximum(f, 0.0)
    Nn, C, Hh, Ww = f.shape
    return f.reshape(Nn, C, Hh // 2, 2, Ww // 2, 2).max(axis=(3, 5))


if __name__ == "__main__":
    N, Cin, Cout, H, W = 2, 4, 8, 16, 16
    kh = kw = 3

    key = jax.random.PRNGKey(0)
    kx, kwt, kbt, kwp, kbp, kn, kg, kb = jax.random.split(key, 8)

    x = jax.random.normal(kx, (N, Cin, H, W), jnp.float32)
    w_theta = 0.2 * jax.random.normal(kwt, (Cout, Cin, kh, kw), jnp.float32)
    b_theta = 0.1 * jax.random.normal(kbt, (Cout,), jnp.float32)
    w_phi = 0.2 * jax.random.normal(kwp, (Cout, Cin, kh, kw), jnp.float32)
    b_phi = 0.1 * jax.random.normal(kbp, (Cout,), jnp.float32)
    bn_gamma = 1.0 + 0.1 * jax.random.normal(kg, (Cout,), jnp.float32)
    bn_beta = 0.1 * jax.random.normal(kb, (Cout,), jnp.float32)

    # torch.randn(phi_x.size()) equivalent, supplied in PyTorch NCHW layout.
    noise = jax.random.normal(kn, (N, Cout, H, W), jnp.float32)

    fwd = jax.jit(conv_block_forward)
    out = fwd(x, w_theta, b_theta, w_phi, b_phi, noise, bn_gamma, bn_beta)
    out = jax.block_until_ready(out)

    ref = _reference(x, w_theta, b_theta, w_phi, b_phi, noise,
                     bn_gamma, bn_beta)
    assert out.shape == (N, Cout, H // 2, W // 2)
    # bf16 conv inputs / bf16 pre-pooled intermediate -> 1e-2 matched-precision
    # tolerance (reference uses f32 for everything past the convs).
    assert jnp.allclose(out, ref, rtol=1e-2, atol=1e-2), float(
        jnp.max(jnp.abs(out - ref)))

    print("KERNEL_OK")
</pallas_src>

<mosaic_0001>
module attributes {stable_mosaic.version = 11 : i64} {
  func.func @_conv_fuse_pool_kernel(%arg0: i32, %arg1: memref<512x128xbf16, #tpu.memory_space<vmem>>, %arg2: memref<128x256xbf16, #tpu.memory_space<vmem>>, %arg3: memref<512x128xbf16, #tpu.memory_space<vmem>>, %arg4: memref<128x128xbf16, #tpu.memory_space<vmem>>, %arg5: memref<128x128xbf16, #tpu.memory_space<vmem>>, %arg6: memref<1x1x128xf32, #tpu.memory_space<vmem>>, %arg7: memref<1x1x128xf32, #tpu.memory_space<vmem>>) attributes {dimension_semantics = [#tpu.dimension_semantics<parallel>], iteration_bounds = array<i64: 1>, scalar_prefetch = 0 : i64, scratch_operands = 0 : i64, tpu.core_type = #tpu.core_type<tc>, window_params = [{transform_indices = @transform_0, window_bounds = array<i64: 512, 128>}, {pipeline_mode = #tpu.pipeline_mode<synchronous>, transform_indices = @transform_1, window_bounds = array<i64: 128, 256>}, {transform_indices = @transform_2, window_bounds = array<i64: 512, 128>}, {transform_indices = @transform_3, window_bounds = array<i64: 128, 128>}, {transform_indices = @transform_4, window_bounds = array<i64: 128, 128>}, {transform_indices = @transform_5, window_bounds = array<i64: 1, 1, 128>}, {transform_indices = @transform_6, window_bounds = array<i64: 1, 1, 128>}]} {
    %c0 = arith.constant 0 : index
    %c0_0 = arith.constant 0 : index
    %0 = vector.load %arg1[%c0, %c0_0] : memref<512x128xbf16, #tpu.memory_space<vmem>>, vector<512x128xbf16>
    %c0_1 = arith.constant 0 : index
    %c0_2 = arith.constant 0 : index
    %1 = vector.load %arg2[%c0_1, %c0_2] : memref<128x256xbf16, #tpu.memory_space<vmem>>, vector<128x256xbf16>
    %cst = arith.constant dense<0.000000e+00> : vector<512x256xf32>
    %2 = tpu.matmul %0, %1, %cst {dimension_numbers = #tpu.dot_dimension_numbers<[1], [0], [0], [1], [0, 0, 1, 1], [], []>} : vector<512x128xbf16>, vector<128x256xbf16>, vector<512x256xf32> -> vector<512x256xf32>
    %3 = vector.extract_strided_slice %2 {offsets = [0, 0], sizes = [512, 128], strides = [1, 1]} : vector<512x256xf32> to vector<512x128xf32>
    %4 = vector.extract_strided_slice %2 {offsets = [0, 128], sizes = [512, 128], strides = [1, 1]} : vector<512x256xf32> to vector<512x128xf32>
    %c0_3 = arith.constant 0 : index
    %c0_4 = arith.constant 0 : index
    %5 = vector.load %arg3[%c0_3, %c0_4] : memref<512x128xbf16, #tpu.memory_space<vmem>>, vector<512x128xbf16>
    %6 = arith.extf %5 : vector<512x128xbf16> to vector<512x128xf32>
    %7 = arith.addf %4, %6 : vector<512x128xf32>
    %cst_5 = arith.constant 2.000000e+01 : f32
    %8 = vector.broadcast %cst_5 : f32 to vector<512x128xf32>
    %9 = arith.cmpf ogt, %7, %8 : vector<512x128xf32>
    %cst_6 = arith.constant 2.000000e+01 : f32
    %10 = vector.broadcast %cst_6 : f32 to vector<512x128xf32>
    %11 = arith.minimumf %7, %10 : vector<512x128xf32>
    %12 = math.exp %11 : vector<512x128xf32>
    %13 = math.log1p %12 : vector<512x128xf32>
    %14 = arith.select %9, %7, %13 : vector<512x128xi1>, vector<512x128xf32>
    %15 = arith.mulf %3, %14 : vector<512x128xf32>
    %cst_7 = arith.constant dense<0.000000e+00> : vector<128xf32>
    %16 = vector.multi_reduction <add>, %15, %cst_7 [0] : vector<512x128xf32> to vector<128xf32>
    %17 = vector.shape_cast %16 : vector<128xf32> to vector<1x128xf32>
    %18 = vector.shape_cast %17 : vector<1x128xf32> to vector<1x1x128xf32>
    %c0_8 = arith.constant 0 : index
    %c0_9 = arith.constant 0 : index
    %c0_10 = arith.constant 0 : index
    %19 = vector.load %arg6[%c0_8, %c0_9, %c0_10] : memref<1x1x128xf32, #tpu.memory_space<vmem>>, vector<1x1x128xf32>
    tpu.vector_store %arg6[%c0_8, %c0_9, %c0_10], %18 {strides = array<i32>} : memref<1x1x128xf32, #tpu.memory_space<vmem>>, vector<1x1x128xf32>,
    %20 = arith.mulf %15, %15 : vector<512x128xf32>
    %cst_11 = arith.constant dense<0.000000e+00> : vector<128xf32>
    %21 = vector.multi_reduction <add>, %20, %cst_11 [0] : vector<512x128xf32> to vector<128xf32>
    %22 = vector.shape_cast %21 : vector<128xf32> to vector<1x128xf32>
    %23 = vector.shape_cast %22 : vector<1x128xf32> to vector<1x1x128xf32>
    %c0_12 = arith.constant 0 : index
    %c0_13 = arith.constant 0 : index
    %c0_14 = arith.constant 0 : index
    %24 = vector.load %arg7[%c0_12, %c0_13, %c0_14] : memref<1x1x128xf32, #tpu.memory_space<vmem>>, vector<1x1x128xf32>
    tpu.vector_store %arg7[%c0_12, %c0_13, %c0_14], %23 {strides = array<i32>} : memref<1x1x128xf32, #tpu.memory_space<vmem>>, vector<1x1x128xf32>,
    %25 = vector.extract_strided_slice %15 {offsets = [0, 0], sizes = [128, 128], strides = [1, 1]} : vector<512x128xf32> to vector<128x128xf32>
    %26 = vector.extract_strided_slice %15 {offsets = [128, 0], sizes = [128, 128], strides = [1, 1]} : vector<512x128xf32> to vector<128x128xf32>
    %27 = vector.extract_strided_slice %15 {offsets = [256, 0], sizes = [128, 128], strides = [1, 1]} : vector<512x128xf32> to vector<128x128xf32>
    %28 = vector.extract_strided_slice %15 {offsets = [384, 0], sizes = [128, 128], strides = [1, 1]} : vector<512x128xf32> to vector<128x128xf32>
    %29 = arith.maximumf %25, %26 : vector<128x128xf32>
    %30 = arith.maximumf %27, %28 : vector<128x128xf32>
    %31 = arith.maximumf %29, %30 : vector<128x128xf32>
    %32 = arith.truncf %31 : vector<128x128xf32> to vector<128x128xbf16>
    %c0_15 = arith.constant 0 : index
    %c0_16 = arith.constant 0 : index
    %33 = vector.load %arg4[%c0_15, %c0_16] : memref<128x128xbf16, #tpu.memory_space<vmem>>, vector<128x128xbf16>
    tpu.vector_store %arg4[%c0_15, %c0_16], %32 {strides = array<i32>} : memref<128x128xbf16, #tpu.memory_space<vmem>>, vector<128x128xbf16>,
    %34 = arith.minimumf %25, %26 : vector<128x128xf32>
    %35 = arith.minimumf %27, %28 : vector<128x128xf32>
    %36 = arith.minimumf %34, %35 : vector<128x128xf32>
    %37 = arith.truncf %36 : vector<128x128xf32> to vector<128x128xbf16>
    %c0_17 = arith.constant 0 : index
    %c0_18 = arith.constant 0 : index
    %38 = vector.load %arg5[%c0_17, %c0_18] : memref<128x128xbf16, #tpu.memory_space<vmem>>, vector<128x128xbf16>
    tpu.vector_store %arg5[%c0_17, %c0_18], %37 {strides = array<i32>} : memref<128x128xbf16, #tpu.memory_space<vmem>>, vector<128x128xbf16>,
    return
  }
  func.func @transform_0(%arg0: i32) -> (i32, i32) {
    %c0_i32 = arith.constant 0 : i32
    %c0_i32_0 = arith.constant 0 : i32
    return %arg0, %c0_i32 : i32, i32
  }
  func.func @transform_1(%arg0: i32) -> (i32, i32) {
    %c0_i32 = arith.constant 0 : i32
    %c0_i32_0 = arith.constant 0 : i32
    %c0_i32_1 = arith.constant 0 : i32
    return %c0_i32, %c0_i32_0 : i32, i32
  }
  func.func @transform_2(%arg0: i32) -> (i32, i32) {
    %c0_i32 = arith.constant 0 : i32
    %c0_i32_0 = arith.constant 0 : i32
    return %arg0, %c0_i32 : i32, i32
  }
  func.func @transform_3(%arg0: i32) -> (i32, i32) {
    %c0_i32 = arith.constant 0 : i32
    %c0_i32_0 = arith.constant 0 : i32
    return %arg0, %c0_i32 : i32, i32
  }
  func.func @transform_4(%arg0: i32) -> (i32, i32) {
    %c0_i32 = arith.constant 0 : i32
    %c0_i32_0 = arith.constant 0 : i32
    return %arg0, %c0_i32 : i32, i32
  }
  func.func @transform_5(%arg0: i32) -> (i32, i32, i32) {
    %c0_i32 = arith.constant 0 : i32
    %c0_i32_0 = arith.constant 0 : i32
    %c0_i32_1 = arith.constant 0 : i32
    return %arg0, %c0_i32, %c0_i32_0 : i32, i32, i32
  }
  func.func @transform_6(%arg0: i32) -> (i32, i32, i32) {
    %c0_i32 = arith.constant 0 : i32
    %c0_i32_0 = arith.constant 0 : i32
    %c0_i32_1 = arith.constant 0 : i32
    return %arg0, %c0_i32, %c0_i32_0 : i32, i32, i32
  }
}

module attributes {stable_mosaic.version = 11 : i64} {
  func.func @_bn_relu_kernel(%arg0: i32, %arg1: memref<128x128xbf16, #tpu.memory_space<vmem>>, %arg2: memref<128x128xbf16, #tpu.memory_space<vmem>>, %arg3: memref<1x128xf32, #tpu.memory_space<vmem>>, %arg4: memref<1x128xf32, #tpu.memory_space<vmem>>, %arg5: memref<128x128xf32, #tpu.memory_space<vmem>>) attributes {dimension_semantics = [#tpu.dimension_semantics<parallel>], iteration_bounds = array<i64: 1>, scalar_prefetch = 0 : i64, scratch_operands = 0 : i64, tpu.core_type = #tpu.core_type<tc>, window_params = [{transform_indices = @transform_0, window_bounds = array<i64: 128, 128>}, {transform_indices = @transform_1, window_bounds = array<i64: 128, 128>}, {pipeline_mode = #tpu.pipeline_mode<synchronous>, transform_indices = @transform_2, window_bounds = array<i64: 1, 128>}, {pipeline_mode = #tpu.pipeline_mode<synchronous>, transform_indices = @transform_3, window_bounds = array<i64: 1, 128>}, {transform_indices = @transform_4, window_bounds = array<i64: 128, 128>}]} {
    %c0 = arith.constant 0 : index
    %c0_0 = arith.constant 0 : index
    %0 = vector.load %arg3[%c0, %c0_0] : memref<1x128xf32, #tpu.memory_space<vmem>>, vector<1x128xf32>
    %c0_1 = arith.constant 0 : index
    %c0_2 = arith.constant 0 : index
    %1 = vector.load %arg4[%c0_1, %c0_2] : memref<1x128xf32, #tpu.memory_space<vmem>>, vector<1x128xf32>
    %cst = arith.constant 0.000000e+00 : f32
    %2 = vector.broadcast %cst : f32 to vector<1x128xf32>
    %3 = arith.maximumf %0, %2 : vector<1x128xf32>
    %cst_3 = arith.constant 0.000000e+00 : f32
    %4 = vector.broadcast %cst_3 : f32 to vector<1x128xf32>
    %5 = arith.minimumf %0, %4 : vector<1x128xf32>
    %c0_4 = arith.constant 0 : index
    %c0_5 = arith.constant 0 : index
    %6 = vector.load %arg1[%c0_4, %c0_5] : memref<128x128xbf16, #tpu.memory_space<vmem>>, vector<128x128xbf16>
    %7 = arith.extf %6 : vector<128x128xbf16> to vector<128x128xf32>
    %8 = vector.broadcast %3 : vector<1x128xf32> to vector<128x128xf32>
    %9 = arith.mulf %7, %8 : vector<128x128xf32>
    %c0_6 = arith.constant 0 : index
    %c0_7 = arith.constant 0 : index
    %10 = vector.load %arg2[%c0_6, %c0_7] : memref<128x128xbf16, #tpu.memory_space<vmem>>, vector<128x128xbf16>
    %11 = arith.extf %10 : vector<128x128xbf16> to vector<128x128xf32>
    %12 = vector.broadcast %5 : vector<1x128xf32> to vector<128x128xf32>
    %13 = arith.mulf %11, %12 : vector<128x128xf32>
    %14 = arith.addf %9, %13 : vector<128x128xf32>
    %15 = vector.broadcast %1 : vector<1x128xf32> to vector<128x128xf32>
    %16 = arith.addf %14, %15 : vector<128x128xf32>
    %cst_8 = arith.constant 0.000000e+00 : f32
    %17 = vector.broadcast %cst_8 : f32 to vector<128x128xf32>
    %18 = arith.maximumf %16, %17 : vector<128x128xf32>
    %c0_9 = arith.constant 0 : index
    %c0_10 = arith.constant 0 : index
    %19 = vector.load %arg5[%c0_9, %c0_10] : memref<128x128xf32, #tpu.memory_space<vmem>>, vector<128x128xf32>
    tpu.vector_store %arg5[%c0_9, %c0_10], %18 {strides = array<i32>} : memref<128x128xf32, #tpu.memory_space<vmem>>, vector<128x128xf32>,
    return
  }
  func.func @transform_0(%arg0: i32) -> (i32, i32) {
    %c0_i32 = arith.constant 0 : i32
    %c0_i32_0 = arith.constant 0 : i32
    return %arg0, %c0_i32 : i32, i32
  }
  func.func @transform_1(%arg0: i32) -> (i32, i32) {
    %c0_i32 = arith.constant 0 : i32
    %c0_i32_0 = arith.constant 0 : i32
    return %arg0, %c0_i32 : i32, i32
  }
  func.func @transform_2(%arg0: i32) -> (i32, i32) {
    %c0_i32 = arith.constant 0 : i32
    %c0_i32_0 = arith.constant 0 : i32
    %c0_i32_1 = arith.constant 0 : i32
    return %c0_i32, %c0_i32_0 : i32, i32
  }
  func.func @transform_3(%arg0: i32) -> (i32, i32) {
    %c0_i32 = arith.constant 0 : i32
    %c0_i32_0 = arith.constant 0 : i32
    %c0_i32_1 = arith.constant 0 : i32
    return %c0_i32, %c0_i32_0 : i32, i32
  }
  func.func @transform_4(%arg0: i32) -> (i32, i32) {
    %c0_i32 = arith.constant 0 : i32
    %c0_i32_0 = arith.constant 0 : i32
    return %arg0, %c0_i32 : i32, i32
  }
}

</mosaic_0001>

<llo_original>
// kernel: conv_block_forward.3
$region0: #{conv_block_forward.3}
  #allocation0 [shape = 'u32[]', space=smem, size = 0x4, offset = 0x4, fixed_abs, tag = 'smem constant byte address 0x4 - core index']
  #allocation1 [shape = 'u32[144,128]{1,0:T(1,128)}', space=vmem, size = 0x12000, scoped, tag = 'internal scratch']
  %s0 = inlined_call_operand.vmem [shape: bf16[128,128], index: 0, kind: input, shape index: {}]
  %s1 = inlined_call_operand.vmem [shape: bf16[128,128], index: 1, kind: input, shape index: {}]
  %s2 = inlined_call_operand.vmem [shape: f32[1,128], index: 2, kind: input, shape index: {}]
  %s3 = inlined_call_operand.vmem [shape: f32[1,128], index: 3, kind: input, shape index: {}]
  %s4 = inlined_call_operand.vmem [shape: f32[128,128], index: 4, kind: output, shape index: {}]
  %s5 = sld [smem:[#allocation0]]
  $region26: #{conv_block_forward.3} parent=0
    _
  %s7 = ssub.s32 1, %s5
  %s8 = scalar_select 0, %s7, %s5
  // Predicated region
  $region2: #{conv_block_forward.3} parent=0 // pred_check
    _
  $region3: #{conv_block_forward.3} parent=0 // pred_check_branch
    %10 = sbr.rel (0) target = $region5
  $region4: #{conv_block_forward.3} parent=0 // pred_region
    _
  $region5: #{conv_block_forward.3} parent=0 // pred_fallthru
    _
  // Predicated region
  $region6: #{conv_block_forward.3} parent=0 // pred_check
    _
  $region7: #{conv_block_forward.3} parent=0 // pred_check_branch
    %12 = sbr.rel (0) target = $region9
  $region8: #{conv_block_forward.3} parent=0 // pred_region
    _
  $region9: #{conv_block_forward.3} parent=0 // pred_fallthru
    _
  // Predicated region
  $region10: #{conv_block_forward.3} parent=0 // pred_check
    _
  $region11: #{conv_block_forward.3} parent=0 // pred_check_branch
    %14 = sbr.rel (0) target = $region13
  $region12: #{conv_block_forward.3} parent=0 // pred_region
    _
  $region13: #{conv_block_forward.3} parent=0 // pred_fallthru
    _
  // Predicated region
  $region14: #{conv_block_forward.3} parent=0 // pred_check
    _
  $region15: #{conv_block_forward.3} parent=0 // pred_check_branch
    %16 = sbr.rel (0) target = $region17
  $region16: #{conv_block_forward.3} parent=0 // pred_region
    _
  $region17: #{conv_block_forward.3} parent=0 // pred_fallthru
    _
  %v17 = vld [vmem:[%s2] sm:$0x1]
  %v18 = vld [vmem:[%s3] sm:$0x1]
  %v19 = vmax.f32 %v17, 0.0
  %v20 = vmin.f32 %v17, 0.0
  %v21 = vld [vmem:[%s0] sm:$0xf]
  %v22 = vld [vmem:[%s0 + $0x4] sm:$0xf]
  %v23 = vld [vmem:[%s0 + $0x8] sm:$0xf]
  %v24 = vld [vmem:[%s0 + $0xc] sm:$0xf]
  %v25 = vld [vmem:[%s0 + $0x10] sm:$0xf]
  %v26 = vld [vmem:[%s0 + $0x14] sm:$0xf]
  %v27 = vld [vmem:[%s0 + $0x18] sm:$0xf]
  %v28 = vld [vmem:[%s0 + $0x1c] sm:$0xf]
  %v29 = vld [vmem:[%s0 + $0x20] sm:$0xf]
  %v30 = vld [vmem:[%s0 + $0x24] sm:$0xf]
  %v31 = vld [vmem:[%s0 + $0x28] sm:$0xf]
  %v32 = vld [vmem:[%s0 + $0x2c] sm:$0xf]
  %v33 = vld [vmem:[%s0 + $0x30] sm:$0xf]
  %v34 = vld [vmem:[%s0 + $0x34] sm:$0xf]
  %v35 = vld [vmem:[%s0 + $0x38] sm:$0xf]
  %v36 = vld [vmem:[%s0 + $0x3c] sm:$0xf]
  %v37 = vunpack.c.l.bf16 %v21
  %v38 = vunpack.c.l.bf16 %v22
  %v39 = vunpack.c.l.bf16 %v23
  %v40 = vunpack.c.l.bf16 %v24
  %v41 = vunpack.c.l.bf16 %v25
  %v42 = vunpack.c.l.bf16 %v26
  %v43 = vunpack.c.l.bf16 %v27
  %v44 = vunpack.c.l.bf16 %v28
  %v45 = vunpack.c.l.bf16 %v29
  %v46 = vunpack.c.l.bf16 %v30
  %v47 = vunpack.c.l.bf16 %v31
  %v48 = vunpack.c.l.bf16 %v32
  %v49 = vunpack.c.l.bf16 %v33
  %v50 = vunpack.c.l.bf16 %v34
  %v51 = vunpack.c.l.bf16 %v35
  %v52 = vunpack.c.l.bf16 %v36
  %v54 = vlaneseq
  %v55 = vshrl.u32 %v54, 7
  %v56 = vsub.s32 0, %v55
  %v57 = vrot.slane %v19, %v56
  %v59 = vmul.f32 %v37, %v57
  %v60 = vmul.f32 %v38, %v57
  %v61 = vmul.f32 %v39, %v57
  %v62 = vmul.f32 %v40, %v57
  %v63 = vmul.f32 %v41, %v57
  %v64 = vmul.f32 %v42, %v57
  %v65 = vmul.f32 %v43, %v57
  %v66 = vmul.f32 %v44, %v57
  %v67 = vmul.f32 %v45, %v57
  %v68 = vmul.f32 %v46, %v57
  %v69 = vmul.f32 %v47, %v57
  %v70 = vmul.f32 %v48, %v57
  %v71 = vmul.f32 %v49, %v57
  %v72 = vmul.f32 %v50, %v57
  %v73 = vmul.f32 %v51, %v57
  %v74 = vmul.f32 %v52, %v57
  %v75 = vld [vmem:[%s1] sm:$0xf]
  %v76 = vld [vmem:[%s1 + $0x4] sm:$0xf]
  %v77 = vld [vmem:[%s1 + $0x8] sm:$0xf]
  %v78 = vld [vmem:[%s1 + $0xc] sm:$0xf]
  %v79 = vld [vmem:[%s1 + $0x10] sm:$0xf]
  %v80 = vld [vmem:[%s1 + $0x14] sm:$0xf]
  %v81 = vld [vmem:[%s1 + $0x18] sm:$0xf]
  %v82 = vld [vmem:[%s1 + $0x1c] sm:$0xf]
  %v83 = vld [vmem:[%s1 + $0x20] sm:$0xf]
  %v84 = vld [vmem:[%s1 + $0x24] sm:$0xf]
  %v85 = vld [vmem:[%s1 + $0x28] sm:$0xf]
  %v86 = vld [vmem:[%s1 + $0x2c] sm:$0xf]
  %v87 = vld [vmem:[%s1 + $0x30] sm:$0xf]
  %v88 = vld [vmem:[%s1 + $0x34] sm:$0xf]
  %v89 = vld [vmem:[%s1 + $0x38] sm:$0xf]
  %v90 = vld [vmem:[%s1 + $0x3c] sm:$0xf]
  %v91 = vunpack.c.l.bf16 %v75
  %v92 = vunpack.c.l.bf16 %v76
  %v93 = vunpack.c.l.bf16 %v77
  %v94 = vunpack.c.l.bf16 %v78
  %v95 = vunpack.c.l.bf16 %v79
  %v96 = vunpack.c.l.bf16 %v80
  %v97 = vunpack.c.l.bf16 %v81
  %v98 = vunpack.c.l.bf16 %v82
  %v99 = vunpack.c.l.bf16 %v83
  %v100 = vunpack.c.l.bf16 %v84
  %v101 = vunpack.c.l.bf16 %v85
  %v102 = vunpack.c.l.bf16 %v86
  %v103 = vunpack.c.l.bf16 %v87
  %v104 = vunpack.c.l.bf16 %v88
  %v105 = vunpack.c.l.bf16 %v89
  %v106 = vunpack.c.l.bf16 %v90
  %v108 = vlaneseq
  %v109 = vshrl.u32 %v108, 7
  %v110 = vsub.s32 0, %v109
  %v111 = vrot.slane %v20, %v110
  %v113 = vmul.f32 %v91, %v111
  %v114 = vmul.f32 %v92, %v111
  %v115 = vmul.f32 %v93, %v111
  %v116 = vmul.f32 %v94, %v111
  %v117 = vmul.f32 %v95, %v111
  %v118 = vmul.f32 %v96, %v111
  %v119 = vmul.f32 %v97, %v111
  %v120 = vmul.f32 %v98, %v111
  %v121 = vmul.f32 %v99, %v111
  %v122 = vmul.f32 %v100, %v111
  %v123 = vmul.f32 %v101, %v111
  %v124 = vmul.f32 %v102, %v111
  %v125 = vmul.f32 %v103, %v111
  %v126 = vmul.f32 %v104, %v111
  %v127 = vmul.f32 %v105, %v111
  %v128 = vmul.f32 %v106, %v111
  %v129 = vadd.f32 %v59, %v113
  %v130 = vadd.f32 %v60, %v114
  %v131 = vadd.f32 %v61, %v115
  %v132 = vadd.f32 %v62, %v116
  %v133 = vadd.f32 %v63, %v117
  %v134 = vadd.f32 %v64, %v118
  %v135 = vadd.f32 %v65, %v119
  %v136 = vadd.f32 %v66, %v120
  %v137 = vadd.f32 %v67, %v121
  %v138 = vadd.f32 %v68, %v122
  %v139 = vadd.f32 %v69, %v123
  %v140 = vadd.f32 %v70, %v124
  %v141 = vadd.f32 %v71, %v125
  %v142 = vadd.f32 %v72, %v126
  %v143 = vadd.f32 %v73, %v127
  %v144 = vadd.f32 %v74, %v128
  %v146 = vlaneseq
  %v147 = vshrl.u32 %v146, 7
  %v148 = vsub.s32 0, %v147
  %v149 = vrot.slane %v18, %v148
  %v151 = vadd.f32 %v129, %v149
  %v152 = vadd.f32 %v130, %v149
  %v153 = vadd.f32 %v131, %v149
  %v154 = vadd.f32 %v132, %v149
  %v155 = vadd.f32 %v133, %v149
  %v156 = vadd.f32 %v134, %v149
  %v157 = vadd.f32 %v135, %v149
  %v158 = vadd.f32 %v136, %v149
  %v159 = vadd.f32 %v137, %v149
  %v160 = vadd.f32 %v138, %v149
  %v161 = vadd.f32 %v139, %v149
  %v162 = vadd.f32 %v140, %v149
  %v163 = vadd.f32 %v141, %v149
  %v164 = vadd.f32 %v142, %v149
  %v165 = vadd.f32 %v143, %v149
  %v166 = vadd.f32 %v144, %v149
  %v167 = vmax.f32 %v151, 0.0
  %v168 = vmax.f32 %v152, 0.0
  %v169 = vmax.f32 %v153, 0.0
  %v170 = vmax.f32 %v154, 0.0
  %v171 = vmax.f32 %v155, 0.0
  %v172 = vmax.f32 %v156, 0.0
  %v173 = vmax.f32 %v157, 0.0
  %v174 = vmax.f32 %v158, 0.0
  %v175 = vmax.f32 %v159, 0.0
  %v176 = vmax.f32 %v160, 0.0
  %v177 = vmax.f32 %v161, 0.0
  %v178 = vmax.f32 %v162, 0.0
  %v179 = vmax.f32 %v163, 0.0
  %v180 = vmax.f32 %v164, 0.0
  %v181 = vmax.f32 %v165, 0.0
  %v182 = vmax.f32 %v166, 0.0
  %183 = vst [vmem:[%s4] sm:$0xff] %v167
  %184 = vst [vmem:[%s4 + $0x8] sm:$0xff] %v168
  %185 = vst [vmem:[%s4 + $0x10] sm:$0xff] %v169
  %186 = vst [vmem:[%s4 + $0x18] sm:$0xff] %v170
  %187 = vst [vmem:[%s4 + $0x20] sm:$0xff] %v171
  %188 = vst [vmem:[%s4 + $0x28] sm:$0xff] %v172
  %189 = vst [vmem:[%s4 + $0x30] sm:$0xff] %v173
  %190 = vst [vmem:[%s4 + $0x38] sm:$0xff] %v174
  %191 = vst [vmem:[%s4 + $0x40] sm:$0xff] %v175
  %192 = vst [vmem:[%s4 + $0x48] sm:$0xff] %v176
  %193 = vst [vmem:[%s4 + $0x50] sm:$0xff] %v177
  %194 = vst [vmem:[%s4 + $0x58] sm:$0xff] %v178
  %195 = vst [vmem:[%s4 + $0x60] sm:$0xff] %v179
  %196 = vst [vmem:[%s4 + $0x68] sm:$0xff] %v180
  %197 = vst [vmem:[%s4 + $0x70] sm:$0xff] %v181
  %198 = vst [vmem:[%s4 + $0x78] sm:$0xff] %v182
  // Predicated region
  $region18: #{conv_block_forward.3} parent=0 // pred_check
    _
  $region19: #{conv_block_forward.3} parent=0 // pred_check_branch
    %200 = sbr.rel (0) target = $region21
  $region20: #{conv_block_forward.3} parent=0 // pred_region
    _
  $region21: #{conv_block_forward.3} parent=0 // pred_fallthru
    _
  // Predicated region
  $region22: #{conv_block_forward.3} parent=0 // pred_check
    _
  $region23: #{conv_block_forward.3} parent=0 // pred_check_branch
    %202 = sbr.rel (0) target = $region25
  $region24: #{conv_block_forward.3} parent=0 // pred_region
    _
  $region25: #{conv_block_forward.3} parent=0 // pred_fallthru
    _

// kernel: conv_block_forward.2
$region0: #{conv_block_forward.2}
  #allocation0 [shape = 'u32[]', space=smem, size = 0x4, offset = 0x4, fixed_abs, tag = 'smem constant byte address 0x4 - core index']
  #allocation1 [shape = 'u32[144,128]{1,0:T(1,128)}', space=vmem, size = 0x12000, scoped, tag = 'internal scratch']
  %s0 = inlined_call_operand.vmem [shape: bf16[512,128], index: 0, kind: input, shape index: {}]
  %s1 = inlined_call_operand.vmem [shape: bf16[128,256], index: 1, kind: input, shape index: {}]
  %s2 = inlined_call_operand.vmem [shape: bf16[512,128], index: 2, kind: input, shape index: {}]
  %s3 = inlined_call_operand.vmem [shape: bf16[128,128], index: 3, kind: output, shape index: {0}]
  %s4 = inlined_call_operand.vmem [shape: bf16[128,128], index: 4, kind: output, shape index: {1}]
  %s5 = inlined_call_operand.vmem [shape: f32[1,1,128], index: 5, kind: output, shape index: {2}]
  %s6 = inlined_call_operand.vmem [shape: f32[1,1,128], index: 6, kind: output, shape index: {3}]
  %7 = xla_tuple %s3, %s4, %s5, %s6
  %s8 = sld [smem:[#allocation0]]
  $region46: #{conv_block_forward.2} parent=0
    _
  %s10 = ssub.s32 1, %s8
  %s11 = scalar_select 0, %s10, %s8
  // Predicated region
  $region2: #{conv_block_forward.2} parent=0 // pred_check
    _
  $region3: #{conv_block_forward.2} parent=0 // pred_check_branch
    %13 = sbr.rel (0) target = $region5
  $region4: #{conv_block_forward.2} parent=0 // pred_region
    _
  $region5: #{conv_block_forward.2} parent=0 // pred_fallthru
    _
  // Predicated region
  $region6: #{conv_block_forward.2} parent=0 // pred_check
    _
  $region7: #{conv_block_forward.2} parent=0 // pred_check_branch
    %15 = sbr.rel (0) target = $region9
  $region8: #{conv_block_forward.2} parent=0 // pred_region
    _
  $region9: #{conv_block_forward.2} parent=0 // pred_fallthru
    _
  // Predicated region
  $region10: #{conv_block_forward.2} parent=0 // pred_check
    _
  $region11: #{conv_block_forward.2} parent=0 // pred_check_branch
    %17 = sbr.rel (0) target = $region13
  $region12: #{conv_block_forward.2} parent=0 // pred_region
    _
  $region13: #{conv_block_forward.2} parent=0 // pred_fallthru
    _
  %v19 = vld [vmem:[%s0] sm:$0xf]
  %v20 = vld [vmem:[%s0 + $0x4] sm:$0xf]
  %v21 = vld [vmem:[%s0 + $0x8] sm:$0xf]
  %v22 = vld [vmem:[%s0 + $0xc] sm:$0xf]
  %v23 = vld [vmem:[%s0 + $0x10] sm:$0xf]
  %v24 = vld [vmem:[%s0 + $0x14] sm:$0xf]
  %v25 = vld [vmem:[%s0 + $0x18] sm:$0xf]
  %v26 = vld [vmem:[%s0 + $0x1c] sm:$0xf]
  %v27 = vld [vmem:[%s0 + $0x20] sm:$0xf]
  %v28 = vld [vmem:[%s0 + $0x24] sm:$0xf]
  %v29 = vld [vmem:[%s0 + $0x28] sm:$0xf]
  %v30 = vld [vmem:[%s0 + $0x2c] sm:$0xf]
  %v31 = vld [vmem:[%s0 + $0x30] sm:$0xf]
  %v32 = vld [vmem:[%s0 + $0x34] sm:$0xf]
  %v33 = vld [vmem:[%s0 + $0x38] sm:$0xf]
  %v34 = vld [vmem:[%s0 + $0x3c] sm:$0xf]
  %v35 = vld [vmem:[%s0 + $0x40] sm:$0xf]
  %v36 = vld [vmem:[%s0 + $0x44] sm:$0xf]
  %v37 = vld [vmem:[%s0 + $0x48] sm:$0xf]
  %v38 = vld [vmem:[%s0 + $0x4c] sm:$0xf]
  %v39 = vld [vmem:[%s0 + $0x50] sm:$0xf]
  %v40 = vld [vmem:[%s0 + $0x54] sm:$0xf]
  %v41 = vld [vmem:[%s0 + $0x58] sm:$0xf]
  %v42 = vld [vmem:[%s0 + $0x5c] sm:$0xf]
  %v43 = vld [vmem:[%s0 + $0x60] sm:$0xf]
  %v44 = vld [vmem:[%s0 + $0x64] sm:$0xf]
  %v45 = vld [vmem:[%s0 + $0x68] sm:$0xf]
  %v46 = vld [vmem:[%s0 + $0x6c] sm:$0xf]
  %v47 = vld [vmem:[%s0 + $0x70] sm:$0xf]
  %v48 = vld [vmem:[%s0 + $0x74] sm:$0xf]
  %v49 = vld [vmem:[%s0 + $0x78] sm:$0xf]
  %v50 = vld [vmem:[%s0 + $0x7c] sm:$0xf]
  %v51 = vld [vmem:[%s0 + $0x80] sm:$0xf]
  %v52 = vld [vmem:[%s0 + $0x84] sm:$0xf]
  %v53 = vld [vmem:[%s0 + $0x88] sm:$0xf]
  %v54 = vld [vmem:[%s0 + $0x8c] sm:$0xf]
  %v55 = vld [vmem:[%s0 + $0x90] sm:$0xf]
  %v56 = vld [vmem:[%s0 + $0x94] sm:$0xf]
  %v57 = vld [vmem:[%s0 + $0x98] sm:$0xf]
  %v58 = vld [vmem:[%s0 + $0x9c] sm:$0xf]
  %v59 = vld [vmem:[%s0 + $0xa0] sm:$0xf]
  %v60 = vld [vmem:[%s0 + $0xa4] sm:$0xf]
  %v61 = vld [vmem:[%s0 + $0xa8] sm:$0xf]
  %v62 = vld [vmem:[%s0 + $0xac] sm:$0xf]
  %v63 = vld [vmem:[%s0 + $0xb0] sm:$0xf]
  %v64 = vld [vmem:[%s0 + $0xb4] sm:$0xf]
  %v65 = vld [vmem:[%s0 + $0xb8] sm:$0xf]
  %v66 = vld [vmem:[%s0 + $0xbc] sm:$0xf]
  %v67 = vld [vmem:[%s0 + $0xc0] sm:$0xf]
  %v68 = vld [vmem:[%s0 + $0xc4] sm:$0xf]
  %v69 = vld [vmem:[%s0 + $0xc8] sm:$0xf]
  %v70 = vld [vmem:[%s0 + $0xcc] sm:$0xf]
  %v71 = vld [vmem:[%s0 + $0xd0] sm:$0xf]
  %v72 = vld [vmem:[%s0 + $0xd4] sm:$0xf]
  %v73 = vld [vmem:[%s0 + $0xd8] sm:$0xf]
  %v74 = vld [vmem:[%s0 + $0xdc] sm:$0xf]
  %v75 = vld [vmem:[%s0 + $0xe0] sm:$0xf]
  %v76 = vld [vmem:[%s0 + $0xe4] sm:$0xf]
  %v77 = vld [vmem:[%s0 + $0xe8] sm:$0xf]
  %v78 = vld [vmem:[%s0 + $0xec] sm:$0xf]
  %v79 = vld [vmem:[%s0 + $0xf0] sm:$0xf]
  %v80 = vld [vmem:[%s0 + $0xf4] sm:$0xf]
  %v81 = vld [vmem:[%s0 + $0xf8] sm:$0xf]
  %v82 = vld [vmem:[%s0 + $0xfc] sm:$0xf]
  %v83 = vld [vmem:[%s1] sm:$0xff]
  %v84 = vld [vmem:[%s1 + $0x8] sm:$0xff]
  %v85 = vld [vmem:[%s1 + $0x10] sm:$0xff]
  %v86 = vld [vmem:[%s1 + $0x18] sm:$0xff]
  %v87 = vld [vmem:[%s1 + $0x20] sm:$0xff]
  %v88 = vld [vmem:[%s1 + $0x28] sm:$0xff]
  %v89 = vld [vmem:[%s1 + $0x30] sm:$0xff]
  %v90 = vld [vmem:[%s1 + $0x38] sm:$0xff]
  %v91 = vld [vmem:[%s1 + $0x40] sm:$0xff]
  %v92 = vld [vmem:[%s1 + $0x48] sm:$0xff]
  %v93 = vld [vmem:[%s1 + $0x50] sm:$0xff]
  %v94 = vld [vmem:[%s1 + $0x58] sm:$0xff]
  %v95 = vld [vmem:[%s1 + $0x60] sm:$0xff]
  %v96 = vld [vmem:[%s1 + $0x68] sm:$0xff]
  %v97 = vld [vmem:[%s1 + $0x70] sm:$0xff]
  %v98 = vld [vmem:[%s1 + $0x78] sm:$0xff]
  %v163 = vunpack.c.l.b16 %v19
  %v164 = vunpack.c.l.b16 %v20
  %v165 = vunpack.c.l.b16 %v21
  %v166 = vunpack.c.l.b16 %v22
  %v167 = vunpack.c.l.b16 %v23
  %v168 = vunpack.c.l.b16 %v24
  %v169 = vunpack.c.l.b16 %v25
  %v170 = vunpack.c.l.b16 %v26
  %v171 = vunpack.c.l.b16 %v27
  %v172 = vunpack.c.l.b16 %v28
  %v173 = vunpack.c.l.b16 %v29
  %v174 = vunpack.c.l.b16 %v30
  %v175 = vunpack.c.l.b16 %v31
  %v176 = vunpack.c.l.b16 %v32
  %v177 = vunpack.c.l.b16 %v33
  %v178 = vunpack.c.l.b16 %v34
  %v179 = vunpack.c.l.b16 %v35
  %v180 = vunpack.c.l.b16 %v36
  %v181 = vunpack.c.l.b16 %v37
  %v182 = vunpack.c.l.b16 %v38
  %v183 = vunpack.c.l.b16 %v39
  %v184 = vunpack.c.l.b16 %v40
  %v185 = vunpack.c.l.b16 %v41
  %v186 = vunpack.c.l.b16 %v42
  %v187 = vunpack.c.l.b16 %v43
  %v188 = vunpack.c.l.b16 %v44
  %v189 = vunpack.c.l.b16 %v45
  %v190 = vunpack.c.l.b16 %v46
  %v191 = vunpack.c.l.b16 %v47
  %v192 = vunpack.c.l.b16 %v48
  %v193 = vunpack.c.l.b16 %v49
  %v194 = vunpack.c.l.b16 %v50
  %v195 = vunpack.c.l.b16 %v51
  %v196 = vunpack.c.l.b16 %v52
  %v197 = vunpack.c.l.b16 %v53
  %v198 = vunpack.c.l.b16 %v54
  %v199 = vunpack.c.l.b16 %v55
  %v200 = vunpack.c.l.b16 %v56
  %v201 = vunpack.c.l.b16 %v57
  %v202 = vunpack.c.l.b16 %v58
  %v203 = vunpack.c.l.b16 %v59
  %v204 = vunpack.c.l.b16 %v60
  %v205 = vunpack.c.l.b16 %v61
  %v206 = vunpack.c.l.b16 %v62
  %v207 = vunpack.c.l.b16 %v63
  %v208 = vunpack.c.l.b16 %v64
  %v209 = vunpack.c.l.b16 %v65
  %v210 = vunpack.c.l.b16 %v66
  %v211 = vunpack.c.l.b16 %v67
  %v212 = vunpack.c.l.b16 %v68
  %v213 = vunpack.c.l.b16 %v69
  %v214 = vunpack.c.l.b16 %v70
  %v215 = vunpack.c.l.b16 %v71
  %v216 = vunpack.c.l.b16 %v72
  %v217 = vunpack.c.l.b16 %v73
  %v218 = vunpack.c.l.b16 %v74
  %v219 = vunpack.c.l.b16 %v75
  %v220 = vunpack.c.l.b16 %v76
  %v221 = vunpack.c.l.b16 %v77
  %v222 = vunpack.c.l.b16 %v78
  %v223 = vunpack.c.l.b16 %v79
  %v224 = vunpack.c.l.b16 %v80
  %v225 = vunpack.c.l.b16 %v81
  %v226 = vunpack.c.l.b16 %v82
  %v227 = vpack.c.b16 %v164, %v163
  %v228 = vpack.c.b16 %v166, %v165
  %v229 = vpack.c.b16 %v168, %v167
  %v230 = vpack.c.b16 %v170, %v169
  %v231 = vpack.c.b16 %v172, %v171
  %v232 = vpack.c.b16 %v174, %v173
  %v233 = vpack.c.b16 %v176, %v175
  %v234 = vpack.c.b16 %v178, %v177
  %v235 = vpack.c.b16 %v180, %v179
  %v236 = vpack.c.b16 %v182, %v181
  %v237 = vpack.c.b16 %v184, %v183
  %v238 = vpack.c.b16 %v186, %v185
  %v239 = vpack.c.b16 %v188, %v187
  %v240 = vpack.c.b16 %v190, %v189
  %v241 = vpack.c.b16 %v192, %v191
  %v242 = vpack.c.b16 %v194, %v193
  %v243 = vpack.c.b16 %v196, %v195
  %v244 = vpack.c.b16 %v198, %v197
  %v245 = vpack.c.b16 %v200, %v199
  %v246 = vpack.c.b16 %v202, %v201
  %v247 = vpack.c.b16 %v204, %v203
  %v248 = vpack.c.b16 %v206, %v205
  %v249 = vpack.c.b16 %v208, %v207
  %v250 = vpack.c.b16 %v210, %v209
  %v251 = vpack.c.b16 %v212, %v211
  %v252 = vpack.c.b16 %v214, %v213
  %v253 = vpack.c.b16 %v216, %v215
  %v254 = vpack.c.b16 %v218, %v217
  %v255 = vpack.c.b16 %v220, %v219
  %v256 = vpack.c.b16 %v222, %v221
  %v257 = vpack.c.b16 %v224, %v223
  %v258 = vpack.c.b16 %v226, %v225
  %v307 = vunpack.c.l.b16 %v83
  %v308 = vunpack.c.h.b16 %v83
  %v309 = vunpack.c.l.b16 %v84
  %v310 = vunpack.c.h.b16 %v84
  %v311 = vunpack.c.l.b16 %v85
  %v312 = vunpack.c.h.b16 %v85
  %v313 = vunpack.c.l.b16 %v86
  %v314 = vunpack.c.h.b16 %v86
  %v315 = vunpack.c.l.b16 %v87
  %v316 = vunpack.c.h.b16 %v87
  %v317 = vunpack.c.l.b16 %v88
  %v318 = vunpack.c.h.b16 %v88
  %v319 = vunpack.c.l.b16 %v89
  %v320 = vunpack.c.h.b16 %v89
  %v321 = vunpack.c.l.b16 %v90
  %v322 = vunpack.c.h.b16 %v90
  %v323 = vunpack.c.l.b16 %v91
  %v324 = vunpack.c.h.b16 %v91
  %v325 = vunpack.c.l.b16 %v92
  %v326 = vunpack.c.h.b16 %v92
  %v327 = vunpack.c.l.b16 %v93
  %v328 = vunpack.c.h.b16 %v93
  %v329 = vunpack.c.l.b16 %v94
  %v330 = vunpack.c.h.b16 %v94
  %v331 = vunpack.c.l.b16 %v95
  %v332 = vunpack.c.h.b16 %v95
  %v333 = vunpack.c.l.b16 %v96
  %v334 = vunpack.c.h.b16 %v96
  %v335 = vunpack.c.l.b16 %v97
  %v336 = vunpack.c.h.b16 %v97
  %v337 = vunpack.c.l.b16 %v98
  %v338 = vunpack.c.h.b16 %v98
  %v339 = vpack.c.b16 %v309, %v307
  %v340 = vpack.c.b16 %v310, %v308
  %v341 = vpack.c.b16 %v313, %v311
  %v342 = vpack.c.b16 %v314, %v312
  %v343 = vpack.c.b16 %v317, %v315
  %v344 = vpack.c.b16 %v318, %v316
  %v345 = vpack.c.b16 %v321, %v319
  %v346 = vpack.c.b16 %v322, %v320
  %v347 = vpack.c.b16 %v325, %v323
  %v348 = vpack.c.b16 %v326, %v324
  %v349 = vpack.c.b16 %v329, %v327
  %v350 = vpack.c.b16 %v330, %v328
  %v351 = vpack.c.b16 %v333, %v331
  %v352 = vpack.c.b16 %v334, %v332
  %v353 = vpack.c.b16 %v337, %v335
  %v354 = vpack.c.b16 %v338, %v336
  %371 = vmatprep.subr.bf16.mxu0 %v340
  %372 = vmatpush1.bf16.msra.mxu0 %v339
  %373 = vmatprep.subr.bf16.mxu0 %v342
  %374 = vmatpush1.bf16.msra.mxu0 %v341
  %375 = vmatprep.subr.bf16.mxu0 %v344
  %376 = vmatpush1.bf16.msra.mxu0 %v343
  %377 = vmatprep.subr.bf16.mxu0 %v346
  %378 = vmatpush1.bf16.msra.mxu0 %v345
  %379 = vmatprep.subr.bf16.mxu0 %v348
  %380 = vmatpush1.bf16.msra.mxu0 %v347
  %381 = vmatprep.subr.bf16.mxu0 %v350
  %382 = vmatpush1.bf16.msra.mxu0 %v349
  %383 = vmatprep.subr.bf16.mxu0 %v352
  %384 = vmatpush1.bf16.msra.mxu0 %v351
  %385 = vmatprep.subr.bf16.mxu0 %v354
  %386 = vmatpush1.bf16.msra.mxu0 %v353
  %387 = vmatprep.subr.bf16.mxu0 0
  %388 = vmatpush1.bf16.msra.mxu0 0
  %389 = vmatprep.subr.bf16.mxu0 0
  %390 = vmatpush1.bf16.msra.mxu0 0
  %391 = vmatprep.subr.bf16.mxu0 0
  %392 = vmatpush1.bf16.msra.mxu0 0
  %393 = vmatprep.subr.bf16.mxu0 0
  %394 = vmatpush1.bf16.msra.mxu0 0
  %395 = vmatprep.subr.bf16.mxu0 0
  %396 = vmatpush1.bf16.msra.mxu0 0
  %397 = vmatprep.subr.bf16.mxu0 0
  %398 = vmatpush1.bf16.msra.mxu0 0
  %399 = vmatprep.subr.bf16.mxu0 0
  %400 = vmatpush1.bf16.msra.mxu0 0
  %401 = vmatprep.subr.bf16.mxu0 0
  %402 = vmatpush1.bf16.msra.mxu0 0
  %403 = vmatprep.mubr.bf16.mxu0 0
  %404 = vmatmul.mubr.bf16.gmra.mrb[0].mxu0 %v227
  %v405 = vpop.f32.mrb[0].mxu0
  %v406 = vadd.f32 0.0, %v405
  %v407 = vpop.f32.mrb[0].mxu0
  %v408 = vadd.f32 0.0, %v407
  %v409 = vpop.f32.mrb[0].mxu0
  %v410 = vadd.f32 0.0, %v409
  %v411 = vpop.f32.mrb[0].mxu0
  %v412 = vadd.f32 0.0, %v411
  %413 = vmatprep.mubr.bf16.mxu0 0
  %414 = vmatmul.mubr.bf16.gmra.mrb[0].mxu0 %v228
  %v415 = vpop.f32.mrb[0].mxu0
  %v416 = vadd.f32 0.0, %v415
  %v417 = vpop.f32.mrb[0].mxu0
  %v418 = vadd.f32 0.0, %v417
  %v419 = vpop.f32.mrb[0].mxu0
  %v420 = vadd.f32 0.0, %v419
  %v421 = vpop.f32.mrb[0].mxu0
  %v422 = vadd.f32 0.0, %v421
  %423 = vmatprep.mubr.bf16.mxu0 0
  %424 = vmatmul.mubr.bf16.gmra.mrb[0].mxu0 %v229
  %v425 = vpop.f32.mrb[0].mxu0
  %v426 = vadd.f32 0.0, %v425
  %v427 = vpop.f32.mrb[0].mxu0
  %v428 = vadd.f32 0.0, %v427
  %v429 = vpop.f32.mrb[0].mxu0
  %v430 = vadd.f32 0.0, %v429
  %v431 = vpop.f32.mrb[0].mxu0
  %v432 = vadd.f32 0.0, %v431
  %433 = vmatprep.mubr.bf16.mxu0 0
  %434 = vmatmul.mubr.bf16.gmra.mrb[0].mxu0 %v230
  %v435 = vpop.f32.mrb[0].mxu0
  %v436 = vadd.f32 0.0, %v435
  %v437 = vpop.f32.mrb[0].mxu0
  %v438 = vadd.f32 0.0, %v437
  %v439 = vpop.f32.mrb[0].mxu0
  %v440 = vadd.f32 0.0, %v439
  %v441 = vpop.f32.mrb[0].mxu0
  %v442 = vadd.f32 0.0, %v441
  %443 = vmatprep.mubr.bf16.mxu0 0
  %444 = vmatmul.mubr.bf16.gmra.mrb[0].mxu0 %v231
  %v445 = vpop.f32.mrb[0].mxu0
  %v446 = vadd.f32 0.0, %v445
  %v447 = vpop.f32.mrb[0].mxu0
  %v448 = vadd.f32 0.0, %v447
  %v449 = vpop.f32.mrb[0].mxu0
  %v450 = vadd.f32 0.0, %v449
  %v451 = vpop.f32.mrb[0].mxu0
  %v452 = vadd.f32 0.0, %v451
  %453 = vmatprep.mubr.bf16.mxu0 0
  %454 = vmatmul.mubr.bf16.gmra.mrb[0].mxu0 %v232
  %v455 = vpop.f32.mrb[0].mxu0
  %v456 = vadd.f32 0.0, %v455
  %v457 = vpop.f32.mrb[0].mxu0
  %v458 = vadd.f32 0.0, %v457
  %v459 = vpop.f32.mrb[0].mxu0
  %v460 = vadd.f32 0.0, %v459
  %v461 = vpop.f32.mrb[0].mxu0
  %v462 = vadd.f32 0.0, %v461
  %463 = vmatprep.mubr.bf16.mxu0 0
  %464 = vmatmul.mubr.bf16.gmra.mrb[0].mxu0 %v233
  %v465 = vpop.f32.mrb[0].mxu0
  %v466 = vadd.f32 0.0, %v465
  %v467 = vpop.f32.mrb[0].mxu0
  %v468 = vadd.f32 0.0, %v467
  %v469 = vpop.f32.mrb[0].mxu0
  %v470 = vadd.f32 0.0, %v469
  %v471 = vpop.f32.mrb[0].mxu0
  %v472 = vadd.f32 0.0, %v471
  %473 = vmatprep.mubr.bf16.mxu0 0
  %474 = vmatmul.mubr.bf16.gmra.mrb[0].mxu0 %v234
  %v475 = vpop.f32.mrb[0].mxu0
  %v476 = vadd.f32 0.0, %v475
  %v477 = vpop.f32.mrb[0].mxu0
  %v478 = vadd.f32 0.0, %v477
  %v479 = vpop.f32.mrb[0].mxu0
  %v480 = vadd.f32 0.0, %v479
  %v481 = vpop.f32.mrb[0].mxu0
  %v482 = vadd.f32 0.0, %v481
  %483 = vmatprep.mubr.bf16.mxu0 0
  %484 = vmatmul.mubr.bf16.gmra.mrb[0].mxu0 %v235
  %v485 = vpop.f32.mrb[0].mxu0
  %v486 = vadd.f32 0.0, %v485
  %v487 = vpop.f32.mrb[0].mxu0
  %v488 = vadd.f32 0.0, %v487
  %v489 = vpop.f32.mrb[0].mxu0
  %v490 = vadd.f32 0.0, %v489
  %v491 = vpop.f32.mrb[0].mxu0
  %v492 = vadd.f32 0.0, %v491
  %493 = vmatprep.mubr.bf16.mxu0 0
  %494 = vmatmul.mubr.bf16.gmra.mrb[0].mxu0 %v236
  %v495 = vpop.f32.mrb[0].mxu0
  %v496 = vadd.f32 0.0, %v495
  %v497 = vpop.f32.mrb[0].mxu0
  %v498 = vadd.f32 0.0, %v497
  %v499 = vpop.f32.mrb[0].mxu0
  %v500 = vadd.f32 0.0, %v499
  %v501 = vpop.f32.mrb[0].mxu0
  %v502 = vadd.f32 0.0, %v501
  %503 = vmatprep.mubr.bf16.mxu0 0
  %504 = vmatmul.mubr.bf16.gmra.mrb[0].mxu0 %v237
  %v505 = vpop.f32.mrb[0].mxu0
  %v506 = vadd.f32 0.0, %v505
  %v507 = vpop.f32.mrb[0].mxu0
  %v508 = vadd.f32 0.0, %v507
  %v509 = vpop.f32.mrb[0].mxu0
  %v510 = vadd.f32 0.0, %v509
  %v511 = vpop.f32.mrb[0].mxu0
  %v512 = vadd.f32 0.0, %v511
  %513 = vmatprep.mubr.bf16.mxu0 0
  %514 = vmatmul.mubr.bf16.gmra.mrb[0].mxu0 %v238
  %v515 = vpop.f32.mrb[0].mxu0
  %v516 = vadd.f32 0.0, %v515
  %v517 = vpop.f32.mrb[0].mxu0
  %v518 = vadd.f32 0.0, %v517
  %v519 = vpop.f32.mrb[0].mxu0
  %v520 = vadd.f32 0.0, %v519
  %v521 = vpop.f32.mrb[0].mxu0
  %v522 = vadd.f32 0.0, %v521
  %523 = vmatprep.mubr.bf16.mxu0 0
  %524 = vmatmul.mubr.bf16.gmra.mrb[0].mxu0 %v239
  %v525 = vpop.f32.mrb[0].mxu0
  %v526 = vadd.f32 0.0, %v525
  %v527 = vpop.f32.mrb[0].mxu0
  %v528 = vadd.f32 0.0, %v527
  %v529 = vpop.f32.mrb[0].mxu0
  %v530 = vadd.f32 0.0, %v529
  %v531 = vpop.f32.mrb[0].mxu0
  %v532 = vadd.f32 0.0, %v531
  %533 = vmatprep.mubr.bf16.mxu0 0
  %534 = vmatmul.mubr.bf16.gmra.mrb[0].mxu0 %v240
  %v535 = vpop.f32.mrb[0].mxu0
  %v536 = vadd.f32 0.0, %v535
  %v537 = vpop.f32.mrb[0].mxu0
  %v538 = vadd.f32 0.0, %v537
  %v539 = vpop.f32.mrb[0].mxu0
  %v540 = vadd.f32 0.0, %v539
  %v541 = vpop.f32.mrb[0].mxu0
  %v542 = vadd.f32 0.0, %v541
  %543 = vmatprep.mubr.bf16.mxu0 0
  %544 = vmatmul.mubr.bf16.gmra.mrb[0].mxu0 %v241
  %v545 = vpop.f32.mrb[0].mxu0
  %v546 = vadd.f32 0.0, %v545
  %v547 = vpop.f32.mrb[0].mxu0
  %v548 = vadd.f32 0.0, %v547
  %v549 = vpop.f32.mrb[0].mxu0
  %v550 = vadd.f32 0.0, %v549
  %v551 = vpop.f32.mrb[0].mxu0
  %v552 = vadd.f32 0.0, %v551
  %553 = vmatprep.mubr.bf16.mxu0 0
  %554 = vmatmul.mubr.bf16.gmra.mrb[0].mxu0 %v242
  %v555 = vpop.f32.mrb[0].mxu0
  %v556 = vadd.f32 0.0, %v555
  %v557 = vpop.f32.mrb[0].mxu0
  %v558 = vadd.f32 0.0, %v557
  %v559 = vpop.f32.mrb[0].mxu0
  %v560 = vadd.f32 0.0, %v559
  %v561 = vpop.f32.mrb[0].mxu0
  %v562 = vadd.f32 0.0, %v561
  %563 = vmatprep.mubr.bf16.mxu0 0
  %564 = vmatmul.mubr.bf16.gmra.mrb[0].mxu0 %v243
  %v565 = vpop.f32.mrb[0].mxu0
  %v566 = vadd.f32 0.0, %v565
  %v567 = vpop.f32.mrb[0].mxu0
  %v568 = vadd.f32 0.0, %v567
  %v569 = vpop.f32.mrb[0].mxu0
  %v570 = vadd.f32 0.0, %v569
  %v571 = vpop.f32.mrb[0].mxu0
  %v572 = vadd.f32 0.0, %v571
  %573 = vmatprep.mubr.bf16.mxu0 0
  %574 = vmatmul.mubr.bf16.gmra.mrb[0].mxu0 %v244
  %v575 = vpop.f32.mrb[0].mxu0
  %v576 = vadd.f32 0.0, %v575
  %v577 = vpop.f32.mrb[0].mxu0
  %v578 = vadd.f32 0.0, %v577
  %v579 = vpop.f32.mrb[0].mxu0
  %v580 = vadd.f32 0.0, %v579
  %v581 = vpop.f32.mrb[0].mxu0
  %v582 = vadd.f32 0.0, %v581
  %583 = vmatprep.mubr.bf16.mxu0 0
  %584 = vmatmul.mubr.bf16.gmra.mrb[0].mxu0 %v245
  %v585 = vpop.f32.mrb[0].mxu0
  %v586 = vadd.f32 0.0, %v585
  %v587 = vpop.f32.mrb[0].mxu0
  %v588 = vadd.f32 0.0, %v587
  %v589 = vpop.f32.mrb[0].mxu0
  %v590 = vadd.f32 0.0, %v589
  %v591 = vpop.f32.mrb[0].mxu0
  %v592 = vadd.f32 0.0, %v591
  %593 = vmatprep.mubr.bf16.mxu0 0
  %594 = vmatmul.mubr.bf16.gmra.mrb[0].mxu0 %v246
  %v595 = vpop.f32.mrb[0].mxu0
  %v596 = vadd.f32 0.0, %v595
  %v597 = vpop.f32.mrb[0].mxu0
  %v598 = vadd.f32 0.0, %v597
  %v599 = vpop.f32.mrb[0].mxu0
  %v600 = vadd.f32 0.0, %v599
  %v601 = vpop.f32.mrb[0].mxu0
  %v602 = vadd.f32 0.0, %v601
  %603 = vmatprep.mubr.bf16.mxu0 0
  %604 = vmatmul.mubr.bf16.gmra.mrb[0].mxu0 %v247
  %v605 = vpop.f32.mrb[0].mxu0
  %v606 = vadd.f32 0.0, %v605
  %v607 = vpop.f32.mrb[0].mxu0
  %v608 = vadd.f32 0.0, %v607
  %v609 = vpop.f32.mrb[0].mxu0
  %v610 = vadd.f32 0.0, %v609
  %v611 = vpop.f32.mrb[0].mxu0
  %v612 = vadd.f32 0.0, %v611
  %613 = vmatprep.mubr.bf16.mxu0 0
  %614 = vmatmul.mubr.bf16.gmra.mrb[0].mxu0 %v248
  %v615 = vpop.f32.mrb[0].mxu0
  %v616 = vadd.f32 0.0, %v615
  %v617 = vpop.f32.mrb[0].mxu0
  %v618 = vadd.f32 0.0, %v617
  %v619 = vpop.f32.mrb[0].mxu0
  %v620 = vadd.f32 0.0, %v619
  %v621 = vpop.f32.mrb[0].mxu0
  %v622 = vadd.f32 0.0, %v621
  %623 = vmatprep.mubr.bf16.mxu0 0
  %624 = vmatmul.mubr.bf16.gmra.mrb[0].mxu0 %v249
  %v625 = vpop.f32.mrb[0].mxu0
  %v626 = vadd.f32 0.0, %v625
  %v627 = vpop.f32.mrb[0].mxu0
  %v628 = vadd.f32 0.0, %v627
  %v629 = vpop.f32.mrb[0].mxu0
  %v630 = vadd.f32 0.0, %v629
  %v631 = vpop.f32.mrb[0].mxu0
  %v632 = vadd.f32 0.0, %v631
  %633 = vmatprep.mubr.bf16.mxu0 0
  %634 = vmatmul.mubr.bf16.gmra.mrb[0].mxu0 %v250
  %v635 = vpop.f32.mrb[0].mxu0
  %v636 = vadd.f32 0.0, %v635
  %v637 = vpop.f32.mrb[0].mxu0
  %v638 = vadd.f32 0.0, %v637
  %v639 = vpop.f32.mrb[0].mxu0
  %v640 = vadd.f32 0.0, %v639
  %v641 = vpop.f32.mrb[0].mxu0
  %v642 = vadd.f32 0.0, %v641
  %643 = vmatprep.mubr.bf16.mxu0 0
  %644 = vmatmul.mubr.bf16.gmra.mrb[0].mxu0 %v251
  %v645 = vpop.f32.mrb[0].mxu0
  %v646 = vadd.f32 0.0, %v645
  %v647 = vpop.f32.mrb[0].mxu0
  %v648 = vadd.f32 0.0, %v647
  %v649 = vpop.f32.mrb[0].mxu0
  %v650 = vadd.f32 0.0, %v649
  %v651 = vpop.f32.mrb[0].mxu0
  %v652 = vadd.f32 0.0, %v651
  %653 = vmatprep.mubr.bf16.mxu0 0
  %654 = vmatmul.mubr.bf16.gmra.mrb[0].mxu0 %v252
  %v655 = vpop.f32.mrb[0].mxu0
  %v656 = vadd.f32 0.0, %v655
  %v657 = vpop.f32.mrb[0].mxu0
  %v658 = vadd.f32 0.0, %v657
  %v659 = vpop.f32.mrb[0].mxu0
  %v660 = vadd.f32 0.0, %v659
  %v661 = vpop.f32.mrb[0].mxu0
  %v662 = vadd.f32 0.0, %v661
  %663 = vmatprep.mubr.bf16.mxu0 0
  %664 = vmatmul.mubr.bf16.gmra.mrb[0].mxu0 %v253
  %v665 = vpop.f32.mrb[0].mxu0
  %v666 = vadd.f32 0.0, %v665
  %v667 = vpop.f32.mrb[0].mxu0
  %v668 = vadd.f32 0.0, %v667
  %v669 = vpop.f32.mrb[0].mxu0
  %v670 = vadd.f32 0.0, %v669
  %v671 = vpop.f32.mrb[0].mxu0
  %v672 = vadd.f32 0.0, %v671
  %673 = vmatprep.mubr.bf16.mxu0 0
  %674 = vmatmul.mubr.bf16.gmra.mrb[0].mxu0 %v254
  %v675 = vpop.f32.mrb[0].mxu0
  %v676 = vadd.f32 0.0, %v675
  %v677 = vpop.f32.mrb[0].mxu0
  %v678 = vadd.f32 0.0, %v677
  %v679 = vpop.f32.mrb[0].mxu0
  %v680 = vadd.f32 0.0, %v679
  %v681 = vpop.f32.mrb[0].mxu0
  %v682 = vadd.f32 0.0, %v681
  %683 = vmatprep.mubr.bf16.mxu0 0
  %684 = vmatmul.mubr.bf16.gmra.mrb[0].mxu0 %v255
  %v685 = vpop.f32.mrb[0].mxu0
  %v686 = vadd.f32 0.0, %v685
  %v687 = vpop.f32.mrb[0].mxu0
  %v688 = vadd.f32 0.0, %v687
  %v689 = vpop.f32.mrb[0].mxu0
  %v690 = vadd.f32 0.0, %v689
  %v691 = vpop.f32.mrb[0].mxu0
  %v692 = vadd.f32 0.0, %v691
  %693 = vmatprep.mubr.bf16.mxu0 0
  %694 = vmatmul.mubr.bf16.gmra.mrb[0].mxu0 %v256
  %v695 = vpop.f32.mrb[0].mxu0
  %v696 = vadd.f32 0.0, %v695
  %v697 = vpop.f32.mrb[0].mxu0
  %v698 = vadd.f32 0.0, %v697
  %v699 = vpop.f32.mrb[0].mxu0
  %v700 = vadd.f32 0.0, %v699
  %v701 = vpop.f32.mrb[0].mxu0
  %v702 = vadd.f32 0.0, %v701
  %703 = vmatprep.mubr.bf16.mxu0 0
  %704 = vmatmul.mubr.bf16.gmra.mrb[0].mxu0 %v257
  %v705 = vpop.f32.mrb[0].mxu0
  %v706 = vadd.f32 0.0, %v705
  %v707 = vpop.f32.mrb[0].mxu0
  %v708 = vadd.f32 0.0, %v707
  %v709 = vpop.f32.mrb[0].mxu0
  %v710 = vadd.f32 0.0, %v709
  %v711 = vpop.f32.mrb[0].mxu0
  %v712 = vadd.f32 0.0, %v711
  %713 = vmatprep.mubr.bf16.mxu0 0
  %714 = vmatmul.mubr.bf16.gmra.mrb[0].mxu0 %v258
  %v715 = vpop.f32.mrb[0].mxu0
  %v716 = vadd.f32 0.0, %v715
  %v717 = vpop.f32.mrb[0].mxu0
  %v718 = vadd.f32 0.0, %v717
  %v719 = vpop.f32.mrb[0].mxu0
  %v720 = vadd.f32 0.0, %v719
  %v721 = vpop.f32.mrb[0].mxu0
  %v722 = vadd.f32 0.0, %v721
  %723 = vdwg.mxu0
  %v724 = vld [vmem:[%s2] sm:$0xf]
  %v725 = vld [vmem:[%s2 + $0x4] sm:$0xf]
  %v726 = vld [vmem:[%s2 + $0x8] sm:$0xf]
  %v727 = vld [vmem:[%s2 + $0xc] sm:$0xf]
  %v728 = vld [vmem:[%s2 + $0x10] sm:$0xf]
  %v729 = vld [vmem:[%s2 + $0x14] sm:$0xf]
  %v730 = vld [vmem:[%s2 + $0x18] sm:$0xf]
  %v731 = vld [vmem:[%s2 + $0x1c] sm:$0xf]
  %v732 = vld [vmem:[%s2 + $0x20] sm:$0xf]
  %v733 = vld [vmem:[%s2 + $0x24] sm:$0xf]
  %v734 = vld [vmem:[%s2 + $0x28] sm:$0xf]
  %v735 = vld [vmem:[%s2 + $0x2c] sm:$0xf]
  %v736 = vld [vmem:[%s2 + $0x30] sm:$0xf]
  %v737 = vld [vmem:[%s2 + $0x34] sm:$0xf]
  %v738 = vld [vmem:[%s2 + $0x38] sm:$0xf]
  %v739 = vld [vmem:[%s2 + $0x3c] sm:$0xf]
  %v740 = vld [vmem:[%s2 + $0x40] sm:$0xf]
  %v741 = vld [vmem:[%s2 + $0x44] sm:$0xf]
  %v742 = vld [vmem:[%s2 + $0x48] sm:$0xf]
  %v743 = vld [vmem:[%s2 + $0x4c] sm:$0xf]
  %v744 = vld [vmem:[%s2 + $0x50] sm:$0xf]
  %v745 = vld [vmem:[%s2 + $0x54] sm:$0xf]
  %v746 = vld [vmem:[%s2 + $0x58] sm:$0xf]
  %v747 = vld [vmem:[%s2 + $0x5c] sm:$0xf]
  %v748 = vld [vmem:[%s2 + $0x60] sm:$0xf]
  %v749 = vld [vmem:[%s2 + $0x64] sm:$0xf]
  %v750 = vld [vmem:[%s2 + $0x68] sm:$0xf]
  %v751 = vld [vmem:[%s2 + $0x6c] sm:$0xf]
  %v752 = vld [vmem:[%s2 + $0x70] sm:$0xf]
  %v753 = vld [vmem:[%s2 + $0x74] sm:$0xf]
  %v754 = vld [vmem:[%s2 + $0x78] sm:$0xf]
  %v755 = vld [vmem:[%s2 + $0x7c] sm:$0xf]
  %v756 = vld [vmem:[%s2 + $0x80] sm:$0xf]
  %v757 = vld [vmem:[%s2 + $0x84] sm:$0xf]
  %v758 = vld [vmem:[%s2 + $0x88] sm:$0xf]
  %v759 = vld [vmem:[%s2 + $0x8c] sm:$0xf]
  %v760 = vld [vmem:[%s2 + $0x90] sm:$0xf]
  %v761 = vld [vmem:[%s2 + $0x94] sm:$0xf]
  %v762 = vld [vmem:[%s2 + $0x98] sm:$0xf]
  %v763 = vld [vmem:[%s2 + $0x9c] sm:$0xf]
  %v764 = vld [vmem:[%s2 + $0xa0] sm:$0xf]
  %v765 = vld [vmem:[%s2 + $0xa4] sm:$0xf]
  %v766 = vld [vmem:[%s2 + $0xa8] sm:$0xf]
  %v767 = vld [vmem:[%s2 + $0xac] sm:$0xf]
  %v768 = vld [vmem:[%s2 + $0xb0] sm:$0xf]
  %v769 = vld [vmem:[%s2 + $0xb4] sm:$0xf]
  %v770 = vld [vmem:[%s2 + $0xb8] sm:$0xf]
  %v771 = vld [vmem:[%s2 + $0xbc] sm:$0xf]
  %v772 = vld [vmem:[%s2 + $0xc0] sm:$0xf]
  %v773 = vld [vmem:[%s2 + $0xc4] sm:$0xf]
  %v774 = vld [vmem:[%s2 + $0xc8] sm:$0xf]
  %v775 = vld [vmem:[%s2 + $0xcc] sm:$0xf]
  %v776 = vld [vmem:[%s2 + $0xd0] sm:$0xf]
  %v777 = vld [vmem:[%s2 + $0xd4] sm:$0xf]
  %v778 = vld [vmem:[%s2 + $0xd8] sm:$0xf]
  %v779 = vld [vmem:[%s2 + $0xdc] sm:$0xf]
  %v780 = vld [vmem:[%s2 + $0xe0] sm:$0xf]
  %v781 = vld [vmem:[%s2 + $0xe4] sm:$0xf]
  %v782 = vld [vmem:[%s2 + $0xe8] sm:$0xf]
  %v783 = vld [vmem:[%s2 + $0xec] sm:$0xf]
  %v784 = vld [vmem:[%s2 + $0xf0] sm:$0xf]
  %v785 = vld [vmem:[%s2 + $0xf4] sm:$0xf]
  %v786 = vld [vmem:[%s2 + $0xf8] sm:$0xf]
  %v787 = vld [vmem:[%s2 + $0xfc] sm:$0xf]
  %v788 = vunpack.c.l.bf16 %v724
  %v789 = vunpack.c.l.bf16 %v725
  %v790 = vunpack.c.l.bf16 %v726
  %v791 = vunpack.c.l.bf16 %v727
  %v792 = vunpack.c.l.bf16 %v728
  %v793 = vunpack.c.l.bf16 %v729
  %v794 = vunpack.c.l.bf16 %v730
  %v795 = vunpack.c.l.bf16 %v731
  %v796 = vunpack.c.l.bf16 %v732
  %v797 = vunpack.c.l.bf16 %v733
  %v798 = vunpack.c.l.bf16 %v734
  %v799 = vunpack.c.l.bf16 %v735
  %v800 = vunpack.c.l.bf16 %v736
  %v801 = vunpack.c.l.bf16 %v737
  %v802 = vunpack.c.l.bf16 %v738
  %v803 = vunpack.c.l.bf16 %v739
  %v804 = vunpack.c.l.bf16 %v740
  %v805 = vunpack.c.l.bf16 %v741
  %v806 = vunpack.c.l.bf16 %v742
  %v807 = vunpack.c.l.bf16 %v743
  %v808 = vunpack.c.l.bf16 %v744
  %v809 = vunpack.c.l.bf16 %v745
  %v810 = vunpack.c.l.bf16 %v746
  %v811 = vunpack.c.l.bf16 %v747
  %v812 = vunpack.c.l.bf16 %v748
  %v813 = vunpack.c.l.bf16 %v749
  %v814 = vunpack.c.l.bf16 %v750
  %v815 = vunpack.c.l.bf16 %v751
  %v816 = vunpack.c.l.bf16 %v752
  %v817 = vunpack.c.l.bf16 %v753
  %v818 = vunpack.c.l.bf16 %v754
  %v819 = vunpack.c.l.bf16 %v755
  %v820 = vunpack.c.l.bf16 %v756
  %v821 = vunpack.c.l.bf16 %v757
  %v822 = vunpack.c.l.bf16 %v758
  %v823 = vunpack.c.l.bf16 %v759
  %v824 = vunpack.c.l.bf16 %v760
  %v825 = vunpack.c.l.bf16 %v761
  %v826 = vunpack.c.l.bf16 %v762
  %v827 = vunpack.c.l.bf16 %v763
  %v828 = vunpack.c.l.bf16 %v764
  %v829 = vunpack.c.l.bf16 %v765
  %v830 = vunpack.c.l.bf16 %v766
  %v831 = vunpack.c.l.bf16 %v767
  %v832 = vunpack.c.l.bf16 %v768
  %v833 = vunpack.c.l.bf16 %v769
  %v834 = vunpack.c.l.bf16 %v770
  %v835 = vunpack.c.l.bf16 %v771
  %v836 = vunpack.c.l.bf16 %v772
  %v837 = vunpack.c.l.bf16 %v773
  %v838 = vunpack.c.l.bf16 %v774
  %v839 = vunpack.c.l.bf16 %v775
  %v840 = vunpack.c.l.bf16 %v776
  %v841 = vunpack.c.l.bf16 %v777
  %v842 = vunpack.c.l.bf16 %v778
  %v843 = vunpack.c.l.bf16 %v779
  %v844 = vunpack.c.l.bf16 %v780
  %v845 = vunpack.c.l.bf16 %v781
  %v846 = vunpack.c.l.bf16 %v782
  %v847 = vunpack.c.l.bf16 %v783
  %v848 = vunpack.c.l.bf16 %v784
  %v849 = vunpack.c.l.bf16 %v785
  %v850 = vunpack.c.l.bf16 %v786
  %v851 = vunpack.c.l.bf16 %v787
  %v852 = vadd.f32 %v408, %v788
  %v853 = vadd.f32 %v412, %v789
  %v854 = vadd.f32 %v418, %v790
  %v855 = vadd.f32 %v422, %v791
  %v856 = vadd.f32 %v428, %v792
  %v857 = vadd.f32 %v432, %v793
  %v858 = vadd.f32 %v438, %v794
  %v859 = vadd.f32 %v442, %v795
  %v860 = vadd.f32 %v448, %v796
  %v861 = vadd.f32 %v452, %v797
  %v862 = vadd.f32 %v458, %v798
  %v863 = vadd.f32 %v462, %v799
  %v864 = vadd.f32 %v468, %v800
  %v865 = vadd.f32 %v472, %v801
  %v866 = vadd.f32 %v478, %v802
  %v867 = vadd.f32 %v482, %v803
  %v868 = vadd.f32 %v488, %v804
  %v869 = vadd.f32 %v492, %v805
  %v870 = vadd.f32 %v498, %v806
  %v871 = vadd.f32 %v502, %v807
  %v872 = vadd.f32 %v508, %v808
  %v873 = vadd.f32 %v512, %v809
  %v874 = vadd.f32 %v518, %v810
  %v875 = vadd.f32 %v522, %v811
  %v876 = vadd.f32 %v528, %v812
  %v877 = vadd.f32 %v532, %v813
  %v878 = vadd.f32 %v538, %v814
  %v879 = vadd.f32 %v542, %v815
  %v880 = vadd.f32 %v548, %v816
  %v881 = vadd.f32 %v552, %v817
  %v882 = vadd.f32 %v558, %v818
  %v883 = vadd.f32 %v562, %v819
  %v884 = vadd.f32 %v568, %v820
  %v885 = vadd.f32 %v572, %v821
  %v886 = vadd.f32 %v578, %v822
  %v887 = vadd.f32 %v582, %v823
  %v888 = vadd.f32 %v588, %v824
  %v889 = vadd.f32 %v592, %v825
  %v890 = vadd.f32 %v598, %v826
  %v891 = vadd.f32 %v602, %v827
  %v892 = vadd.f32 %v608, %v828
  %v893 = vadd.f32 %v612, %v829
  %v894 = vadd.f32 %v618, %v830
  %v895 = vadd.f32 %v622, %v831
  %v896 = vadd.f32 %v628, %v832
  %v897 = vadd.f32 %v632, %v833
  %v898 = vadd.f32 %v638, %v834
  %v899 = vadd.f32 %v642, %v835
  %v900 = vadd.f32 %v648, %v836
  %v901 = vadd.f32 %v652, %v837
  %v902 = vadd.f32 %v658, %v838
  %v903 = vadd.f32 %v662, %v839
  %v904 = vadd.f32 %v668, %v840
  %v905 = vadd.f32 %v672, %v841
  %v906 = vadd.f32 %v678, %v842
  %v907 = vadd.f32 %v682, %v843
  %v908 = vadd.f32 %v688, %v844
  %v909 = vadd.f32 %v692, %v845
  %v910 = vadd.f32 %v698, %v846
  %v911 = vadd.f32 %v702, %v847
  %v912 = vadd.f32 %v708, %v848
  %v913 = vadd.f32 %v712, %v849
  %v914 = vadd.f32 %v718, %v850
  %v915 = vadd.f32 %v722, %v851
  %vm916 = vcmp.gt.f32.partialorder %v852, 20.0
  %vm917 = vcmp.gt.f32.partialorder %v853, 20.0
  %vm918 = vcmp.gt.f32.partialorder %v854, 20.0
  %vm919 = vcmp.gt.f32.partialorder %v855, 20.0
  %vm920 = vcmp.gt.f32.partialorder %v856, 20.0
  %vm921 = vcmp.gt.f32.partialorder %v857, 20.0
  %vm922 = vcmp.gt.f32.partialorder %v858, 20.0
  %vm923 = vcmp.gt.f32.partialorder %v859, 20.0
  %vm924 = vcmp.gt.f32.partialorder %v860, 20.0
  %vm925 = vcmp.gt.f32.partialorder %v861, 20.0
  %vm926 = vcmp.gt.f32.partialorder %v862, 20.0
  %vm927 = vcmp.gt.f32.partialorder %v863, 20.0
  %vm928 = vcmp.gt.f32.partialorder %v864, 20.0
  %vm929 = vcmp.gt.f32.partialorder %v865, 20.0
  %vm930 = vcmp.gt.f32.partialorder %v866, 20.0
  %vm931 = vcmp.gt.f32.partialorder %v867, 20.0
  %vm932 = vcmp.gt.f32.partialorder %v868, 20.0
  %vm933 = vcmp.gt.f32.partialorder %v869, 20.0
  %vm934 = vcmp.gt.f32.partialorder %v870, 20.0
  %vm935 = vcmp.gt.f32.partialorder %v871, 20.0
  %vm936 = vcmp.gt.f32.partialorder %v872, 20.0
  %vm937 = vcmp.gt.f32.partialorder %v873, 20.0
  %vm938 = vcmp.gt.f32.partialorder %v874, 20.0
  %vm939 = vcmp.gt.f32.partialorder %v875, 20.0
  %vm940 = vcmp.gt.f32.partialorder %v876, 20.0
  %vm941 = vcmp.gt.f32.partialorder %v877, 20.0
  %vm942 = vcmp.gt.f32.partialorder %v878, 20.0
  %vm943 = vcmp.gt.f32.partialorder %v879, 20.0
  %vm944 = vcmp.gt.f32.partialorder %v880, 20.0
  %vm945 = vcmp.gt.f32.partialorder %v881, 20.0
  %vm946 = vcmp.gt.f32.partialorder %v882, 20.0
  %vm947 = vcmp.gt.f32.partialorder %v883, 20.0
  %vm948 = vcmp.gt.f32.partialorder %v884, 20.0
  %vm949 = vcmp.gt.f32.partialorder %v885, 20.0
  %vm950 = vcmp.gt.f32.partialorder %v886, 20.0
  %vm951 = vcmp.gt.f32.partialorder %v887, 20.0
  %vm952 = vcmp.gt.f32.partialorder %v888, 20.0
  %vm953 = vcmp.gt.f32.partialorder %v889, 20.0
  %vm954 = vcmp.gt.f32.partialorder %v890, 20.0
  %vm955 = vcmp.gt.f32.partialorder %v891, 20.0
  %vm956 = vcmp.gt.f32.partialorder %v892, 20.0
  %vm957 = vcmp.gt.f32.partialorder %v893, 20.0
  %vm958 = vcmp.gt.f32.partialorder %v894, 20.0
  %vm959 = vcmp.gt.f32.partialorder %v895, 20.0
  %vm960 = vcmp.gt.f32.partialorder %v896, 20.0
  %vm961 = vcmp.gt.f32.partialorder %v897, 20.0
  %vm962 = vcmp.gt.f32.partialorder %v898, 20.0
  %vm963 = vcmp.gt.f32.partialorder %v899, 20.0
  %vm964 = vcmp.gt.f32.partialorder %v900, 20.0
  %vm965 = vcmp.gt.f32.partialorder %v901, 20.0
  %vm966 = vcmp.gt.f32.partialorder %v902, 20.0
  %vm967 = vcmp.gt.f32.partialorder %v903, 20.0
  %vm968 = vcmp.gt.f32.partialorder %v904, 20.0
  %vm969 = vcmp.gt.f32.partialorder %v905, 20.0
  %vm970 = vcmp.gt.f32.partialorder %v906, 20.0
  %vm971 = vcmp.gt.f32.partialorder %v907, 20.0
  %vm972 = vcmp.gt.f32.partialorder %v908, 20.0
  %vm973 = vcmp.gt.f32.partialorder %v909, 20.0
  %vm974 = vcmp.gt.f32.partialorder %v910, 20.0
  %vm975 = vcmp.gt.f32.partialorder %v911, 20.0
  %vm976 = vcmp.gt.f32.partialorder %v912, 20.0
  %vm977 = vcmp.gt.f32.partialorder %v913, 20.0
  %vm978 = vcmp.gt.f32.partialorder %v914, 20.0
  %vm979 = vcmp.gt.f32.partialorder %v915, 20.0
  %v980 = vmin.f32 %v852, 20.0
  %v981 = vmin.f32 %v853, 20.0
  %v982 = vmin.f32 %v854, 20.0
  %v983 = vmin.f32 %v855, 20.0
  %v984 = vmin.f32 %v856, 20.0
  %v985 = vmin.f32 %v857, 20.0
  %v986 = vmin.f32 %v858, 20.0
  %v987 = vmin.f32 %v859, 20.0
  %v988 = vmin.f32 %v860, 20.0
  %v989 = vmin.f32 %v861, 20.0
  %v990 = vmin.f32 %v862, 20.0
  %v991 = vmin.f32 %v863, 20.0
  %v992 = vmin.f32 %v864, 20.0
  %v993 = vmin.f32 %v865, 20.0
  %v994 = vmin.f32 %v866, 20.0
  %v995 = vmin.f32 %v867, 20.0
  %v996 = vmin.f32 %v868, 20.0
  %v997 = vmin.f32 %v869, 20.0
  %v998 = vmin.f32 %v870, 20.0
  %v999 = vmin.f32 %v871, 20.0
  %v1000 = vmin.f32 %v872, 20.0
  %v1001 = vmin.f32 %v873, 20.0
  %v1002 = vmin.f32 %v874, 20.0
  %v1003 = vmin.f32 %v875, 20.0
  %v1004 = vmin.f32 %v876, 20.0
  %v1005 = vmin.f32 %v877, 20.0
  %v1006 = vmin.f32 %v878, 20.0
  %v1007 = vmin.f32 %v879, 20.0
  %v1008 = vmin.f32 %v880, 20.0
  %v1009 = vmin.f32 %v881, 20.0
  %v1010 = vmin.f32 %v882, 20.0
  %v1011 = vmin.f32 %v883, 20.0
  %v1012 = vmin.f32 %v884, 20.0
  %v1013 = vmin.f32 %v885, 20.0
  %v1014 = vmin.f32 %v886, 20.0
  %v1015 = vmin.f32 %v887, 20.0
  %v1016 = vmin.f32 %v888, 20.0
  %v1017 = vmin.f32 %v889, 20.0
  %v1018 = vmin.f32 %v890, 20.0
  %v1019 = vmin.f32 %v891, 20.0
  %v1020 = vmin.f32 %v892, 20.0
  %v1021 = vmin.f32 %v893, 20.0
  %v1022 = vmin.f32 %v894, 20.0
  %v1023 = vmin.f32 %v895, 20.0
  %v1024 = vmin.f32 %v896, 20.0
  %v1025 = vmin.f32 %v897, 20.0
  %v1026 = vmin.f32 %v898, 20.0
  %v1027 = vmin.f32 %v899, 20.0
  %v1028 = vmin.f32 %v900, 20.0
  %v1029 = vmin.f32 %v901, 20.0
  %v1030 = vmin.f32 %v902, 20.0
  %v1031 = vmin.f32 %v903, 20.0
  %v1032 = vmin.f32 %v904, 20.0
  %v1033 = vmin.f32 %v905, 20.0
  %v1034 = vmin.f32 %v906, 20.0
  %v1035 = vmin.f32 %v907, 20.0
  %v1036 = vmin.f32 %v908, 20.0
  %v1037 = vmin.f32 %v909, 20.0
  %v1038 = vmin.f32 %v910, 20.0
  %v1039 = vmin.f32 %v911, 20.0
  %v1040 = vmin.f32 %v912, 20.0
  %v1041 = vmin.f32 %v913, 20.0
  %v1042 = vmin.f32 %v914, 20.0
  %v1043 = vmin.f32 %v915, 20.0
  %v1044 = vmul.f32 %v980, 1.442695
  %v1045 = vpow.pop %v1044
  %v1046 = vmul.f32 %v981, 1.442695
  %v1047 = vpow.pop %v1046
  %v1048 = vmul.f32 %v982, 1.442695
  %v1049 = vpow.pop %v1048
  %v1050 = vmul.f32 %v983, 1.442695
  %v1051 = vpow.pop %v1050
  %v1052 = vmul.f32 %v984, 1.442695
  %v1053 = vpow.pop %v1052
  %v1054 = vmul.f32 %v985, 1.442695
  %v1055 = vpow.pop %v1054
  %v1056 = vmul.f32 %v986, 1.442695
  %v1057 = vpow.pop %v1056
  %v1058 = vmul.f32 %v987, 1.442695
  %v1059 = vpow.pop %v1058
  %v1060 = vmul.f32 %v988, 1.442695
  %v1061 = vpow.pop %v1060
  %v1062 = vmul.f32 %v989, 1.442695
  %v1063 = vpow.pop %v1062
  %v1064 = vmul.f32 %v990, 1.442695
  %v1065 = vpow.pop %v1064
  %v1066 = vmul.f32 %v991, 1.442695
  %v1067 = vpow.pop %v1066
  %v1068 = vmul.f32 %v992, 1.442695
  %v1069 = vpow.pop %v1068
  %v1070 = vmul.f32 %v993, 1.442695
  %v1071 = vpow.pop %v1070
  %v1072 = vmul.f32 %v994, 1.442695
  %v1073 = vpow.pop %v1072
  %v1074 = vmul.f32 %v995, 1.442695
  %v1075 = vpow.pop %v1074
  %v1076 = vmul.f32 %v996, 1.442695
  %v1077 = vpow.pop %v1076
  %v1078 = vmul.f32 %v997, 1.442695
  %v1079 = vpow.pop %v1078
  %v1080 = vmul.f32 %v998, 1.442695
  %v1081 = vpow.pop %v1080
  %v1082 = vmul.f32 %v999, 1.442695
  %v1083 = vpow.pop %v1082
  %v1084 = vmul.f32 %v1000, 1.442695
  %v1085 = vpow.pop %v1084
  %v1086 = vmul.f32 %v1001, 1.442695
  %v1087 = vpow.pop %v1086
  %v1088 = vmul.f32 %v1002, 1.442695
  %v1089 = vpow.pop %v1088
  %v1090 = vmul.f32 %v1003, 1.442695
  %v1091 = vpow.pop %v1090
  %v1092 = vmul.f32 %v1004, 1.442695
  %v1093 = vpow.pop %v1092
  %v1094 = vmul.f32 %v1005, 1.442695
  %v1095 = vpow.pop %v1094
  %v1096 = vmul.f32 %v1006, 1.442695
  %v1097 = vpow.pop %v1096
  %v1098 = vmul.f32 %v1007, 1.442695
  %v1099 = vpow.pop %v1098
  %v1100 = vmul.f32 %v1008, 1.442695
  %v1101 = vpow.pop %v1100
  %v1102 = vmul.f32 %v1009, 1.442695
  %v1103 = vpow.pop %v1102
  %v1104 = vmul.f32 %v1010, 1.442695
  %v1105 = vpow.pop %v1104
  %v1106 = vmul.f32 %v1011, 1.442695
  %v1107 = vpow.pop %v1106
  %v1108 = vmul.f32 %v1012, 1.442695
  %v1109 = vpow.pop %v1108
  %v1110 = vmul.f32 %v1013, 1.442695
  %v1111 = vpow.pop %v1110
  %v1112 = vmul.f32 %v1014, 1.442695
  %v1113 = vpow.pop %v1112
  %v1114 = vmul.f32 %v1015, 1.442695
  %v1115 = vpow.pop %v1114
  %v1116 = vmul.f32 %v1016, 1.442695
  %v1117 = vpow.pop %v1116
  %v1118 = vmul.f32 %v1017, 1.442695
  %v1119 = vpow.pop %v1118
  %v1120 = vmul.f32 %v1018, 1.442695
  %v1121 = vpow.pop %v1120
  %v1122 = vmul.f32 %v1019, 1.442695
  %v1123 = vpow.pop %v1122
  %v1124 = vmul.f32 %v1020, 1.442695
  %v1125 = vpow.pop %v1124
  %v1126 = vmul.f32 %v1021, 1.442695
  %v1127 = vpow.pop %v1126
  %v1128 = vmul.f32 %v1022, 1.442695
  %v1129 = vpow.pop %v1128
  %v1130 = vmul.f32 %v1023, 1.442695
  %v1131 = vpow.pop %v1130
  %v1132 = vmul.f32 %v1024, 1.442695
  %v1133 = vpow.pop %v1132
  %v1134 = vmul.f32 %v1025, 1.442695
  %v1135 = vpow.pop %v1134
  %v1136 = vmul.f32 %v1026, 1.442695
  %v1137 = vpow.pop %v1136
  %v1138 = vmul.f32 %v1027, 1.442695
  %v1139 = vpow.pop %v1138
  %v1140 = vmul.f32 %v1028, 1.442695
  %v1141 = vpow.pop %v1140
  %v1142 = vmul.f32 %v1029, 1.442695
  %v1143 = vpow.pop %v1142
  %v1144 = vmul.f32 %v1030, 1.442695
  %v1145 = vpow.pop %v1144
  %v1146 = vmul.f32 %v1031, 1.442695
  %v1147 = vpow.pop %v1146
  %v1148 = vmul.f32 %v1032, 1.442695
  %v1149 = vpow.pop %v1148
  %v1150 = vmul.f32 %v1033, 1.442695
  %v1151 = vpow.pop %v1150
  %v1152 = vmul.f32 %v1034, 1.442695
  %v1153 = vpow.pop %v1152
  %v1154 = vmul.f32 %v1035, 1.442695
  %v1155 = vpow.pop %v1154
  %v1156 = vmul.f32 %v1036, 1.442695
  %v1157 = vpow.pop %v1156
  %v1158 = vmul.f32 %v1037, 1.442695
  %v1159 = vpow.pop %v1158
  %v1160 = vmul.f32 %v1038, 1.442695
  %v1161 = vpow.pop %v1160
  %v1162 = vmul.f32 %v1039, 1.442695
  %v1163 = vpow.pop %v1162
  %v1164 = vmul.f32 %v1040, 1.442695
  %v1165 = vpow.pop %v1164
  %v1166 = vmul.f32 %v1041, 1.442695
  %v1167 = vpow.pop %v1166
  %v1168 = vmul.f32 %v1042, 1.442695
  %v1169 = vpow.pop %v1168
  %v1170 = vmul.f32 %v1043, 1.442695
  %v1171 = vpow.pop %v1170
  %v1172 = vadd.f32 %v1045, 1.0
  %v1173 = vlog2.pop %v1172
  %v1174 = vmul.f32 %v1173, 0.6931472
  %v1175 = vmul.f32 -0.5, %v1045
  %v1176 = vadd.f32 %v1175, 1.0
  %v1177 = vmul.f32 %v1176, %v1045
  %v1178 = vand.u32 2147483647, %v1045
  %vm1179 = vcmp.lt.f32.partialorder %v1178, 0.0004427343
  %v1180 = vsel %vm1179, %v1177, %v1174
  %v1181 = vadd.f32 %v1047, 1.0
  %v1182 = vlog2.pop %v1181
  %v1183 = vmul.f32 %v1182, 0.6931472
  %v1184 = vmul.f32 -0.5, %v1047
  %v1185 = vadd.f32 %v1184, 1.0
  %v1186 = vmul.f32 %v1185, %v1047
  %v1187 = vand.u32 2147483647, %v1047
  %vm1188 = vcmp.lt.f32.partialorder %v1187, 0.0004427343
  %v1189 = vsel %vm1188, %v1186, %v1183
  %v1190 = vadd.f32 %v1049, 1.0
  %v1191 = vlog2.pop %v1190
  %v1192 = vmul.f32 %v1191, 0.6931472
  %v1193 = vmul.f32 -0.5, %v1049
  %v1194 = vadd.f32 %v1193, 1.0
  %v1195 = vmul.f32 %v1194, %v1049
  %v1196 = vand.u32 2147483647, %v1049
  %vm1197 = vcmp.lt.f32.partialorder %v1196, 0.0004427343
  %v1198 = vsel %vm1197, %v1195, %v1192
  %v1199 = vadd.f32 %v1051, 1.0
  %v1200 = vlog2.pop %v1199
  %v1201 = vmul.f32 %v1200, 0.6931472
  %v1202 = vmul.f32 -0.5, %v1051
  %v1203 = vadd.f32 %v1202, 1.0
  %v1204 = vmul.f32 %v1203, %v1051
  %v1205 = vand.u32 2147483647, %v1051
  %vm1206 = vcmp.lt.f32.partialorder %v1205, 0.0004427343
  %v1207 = vsel %vm1206, %v1204, %v1201
  %v1208 = vadd.f32 %v1053, 1.0
  %v1209 = vlog2.pop %v1208
  %v1210 = vmul.f32 %v1209, 0.6931472
  %v1211 = vmul.f32 -0.5, %v1053
  %v1212 = vadd.f32 %v1211, 1.0
  %v1213 = vmul.f32 %v1212, %v1053
  %v1214 = vand.u32 2147483647, %v1053
  %vm1215 = vcmp.lt.f32.partialorder %v1214, 0.0004427343
  %v1216 = vsel %vm1215, %v1213, %v1210
  %v1217 = vadd.f32 %v1055, 1.0
  %v1218 = vlog2.pop %v1217
  %v1219 = vmul.f32 %v1218, 0.6931472
  %v1220 = vmul.f32 -0.5, %v1055
  %v1221 = vadd.f32 %v1220, 1.0
  %v1222 = vmul.f32 %v1221, %v1055
  %v1223 = vand.u32 2147483647, %v1055
  %vm1224 = vcmp.lt.f32.partialorder %v1223, 0.0004427343
  %v1225 = vsel %vm1224, %v1222, %v1219
  %v1226 = vadd.f32 %v1057, 1.0
  %v1227 = vlog2.pop %v1226
  %v1228 = vmul.f32 %v1227, 0.6931472
  %v1229 = vmul.f32 -0.5, %v1057
  %v1230 = vadd.f32 %v1229, 1.0
  %v1231 = vmul.f32 %v1230, %v1057
  %v1232 = vand.u32 2147483647, %v1057
  %vm1233 = vcmp.lt.f32.partialorder %v1232, 0.0004427343
  %v1234 = vsel %vm1233, %v1231, %v1228
  %v1235 = vadd.f32 %v1059, 1.0
  %v1236 = vlog2.pop %v1235
  %v1237 = vmul.f32 %v1236, 0.6931472
  %v1238 = vmul.f32 -0.5, %v1059
  %v1239 = vadd.f32 %v1238, 1.0
  %v1240 = vmul.f32 %v1239, %v1059
  %v1241 = vand.u32 2147483647, %v1059
  %vm1242 = vcmp.lt.f32.partialorder %v1241, 0.0004427343
  %v1243 = vsel %vm1242, %v1240, %v1237
  %v1244 = vadd.f32 %v1061, 1.0
  %v1245 = vlog2.pop %v1244
  %v1246 = vmul.f32 %v1245, 0.6931472
  %v1247 = vmul.f32 -0.5, %v1061
  %v1248 = vadd.f32 %v1247, 1.0
  %v1249 = vmul.f32 %v1248, %v1061
  %v1250 = vand.u32 2147483647, %v1061
  %vm1251 = vcmp.lt.f32.partialorder %v1250, 0.0004427343
  %v1252 = vsel %vm1251, %v1249, %v1246
  %v1253 = vadd.f32 %v1063, 1.0
  %v1254 = vlog2.pop %v1253
  %v1255 = vmul.f32 %v1254, 0.6931472
  %v1256 = vmul.f32 -0.5, %v1063
  %v1257 = vadd.f32 %v1256, 1.0
  %v1258 = vmul.f32 %v1257, %v1063
  %v1259 = vand.u32 2147483647, %v1063
  %vm1260 = vcmp.lt.f32.partialorder %v1259, 0.0004427343
  %v1261 = vsel %vm1260, %v1258, %v1255
  %v1262 = vadd.f32 %v1065, 1.0
  %v1263 = vlog2.pop %v1262
  %v1264 = vmul.f32 %v1263, 0.6931472
  %v1265 = vmul.f32 -0.5, %v1065
  %v1266 = vadd.f32 %v1265, 1.0
  %v1267 = vmul.f32 %v1266, %v1065
  %v1268 = vand.u32 2147483647, %v1065
  %vm1269 = vcmp.lt.f32.partialorder %v1268, 0.0004427343
  %v1270 = vsel %vm1269, %v1267, %v1264
  %v1271 = vadd.f32 %v1067, 1.0
  %v1272 = vlog2.pop %v1271
  %v1273 = vmul.f32 %v1272, 0.6931472
  %v1274 = vmul.f32 -0.5, %v1067
  %v1275 = vadd.f32 %v1274, 1.0
  %v1276 = vmul.f32 %v1275, %v1067
  %v1277 = vand.u32 2147483647, %v1067
  %vm1278 = vcmp.lt.f32.partialorder %v1277, 0.0004427343
  %v1279 = vsel %vm1278, %v1276, %v1273
  %v1280 = vadd.f32 %v1069, 1.0
  %v1281 = vlog2.pop %v1280
  %v1282 = vmul.f32 %v1281, 0.6931472
  %v1283 = vmul.f32 -0.5, %v1069
  %v1284 = vadd.f32 %v1283, 1.0
  %v1285 = vmul.f32 %v1284, %v1069
  %v1286 = vand.u32 2147483647, %v1069
  %vm1287 = vcmp.lt.f32.partialorder %v1286, 0.0004427343
  %v1288 = vsel %vm1287, %v1285, %v1282
  %v1289 = vadd.f32 %v1071, 1.0
  %v1290 = vlog2.pop %v1289
  %v1291 = vmul.f32 %v1290, 0.6931472
  %v1292 = vmul.f32 -0.5, %v1071
  %v1293 = vadd.f32 %v1292, 1.0
  %v1294 = vmul.f32 %v1293, %v1071
  %v1295 = vand.u32 2147483647, %v1071
  %vm1296 = vcmp.lt.f32.partialorder %v1295, 0.0004427343
  %v1297 = vsel %vm1296, %v1294, %v1291
  %v1298 = vadd.f32 %v1073, 1.0
  %v1299 = vlog2.pop %v1298
  %v1300 = vmul.f32 %v1299, 0.6931472
  %v1301 = vmul.f32 -0.5, %v1073
  %v1302 = vadd.f32 %v1301, 1.0
  %v1303 = vmul.f32 %v1302, %v1073
  %v1304 = vand.u32 2147483647, %v1073
  %vm1305 = vcmp.lt.f32.partialorder %v1304, 0.0004427343
  %v1306 = vsel %vm1305, %v1303, %v1300
  %v1307 = vadd.f32 %v1075, 1.0
  %v1308 = vlog2.pop %v1307
  %v1309 = vmul.f32 %v1308, 0.6931472
  %v1310 = vmul.f32 -0.5, %v1075
  %v1311 = vadd.f32 %v1310, 1.0
  %v1312 = vmul.f32 %v1311, %v1075
  %v1313 = vand.u32 2147483647, %v1075
  %vm1314 = vcmp.lt.f32.partialorder %v1313, 0.0004427343
  %v1315 = vsel %vm1314, %v1312, %v1309
  %v1316 = vadd.f32 %v1077, 1.0
  %v1317 = vlog2.pop %v1316
  %v1318 = vmul.f32 %v1317, 0.6931472
  %v1319 = vmul.f32 -0.5, %v1077
  %v1320 = vadd.f32 %v1319, 1.0
  %v1321 = vmul.f32 %v1320, %v1077
  %v1322 = vand.u32 2147483647, %v1077
  %vm1323 = vcmp.lt.f32.partialorder %v1322, 0.0004427343
  %v1324 = vsel %vm1323, %v1321, %v1318
  %v1325 = vadd.f32 %v1079, 1.0
  %v1326 = vlog2.pop %v1325
  %v1327 = vmul.f32 %v1326, 0.6931472
  %v1328 = vmul.f32 -0.5, %v1079
  %v1329 = vadd.f32 %v1328, 1.0
  %v1330 = vmul.f32 %v1329, %v1079
  %v1331 = vand.u32 2147483647, %v1079
  %vm1332 = vcmp.lt.f32.partialorder %v1331, 0.0004427343
  %v1333 = vsel %vm1332, %v1330, %v1327
  %v1334 = vadd.f32 %v1081, 1.0
  %v1335 = vlog2.pop %v1334
  %v1336 = vmul.f32 %v1335, 0.6931472
  %v1337 = vmul.f32 -0.5, %v1081
  %v1338 = vadd.f32 %v1337, 1.0
  %v1339 = vmul.f32 %v1338, %v1081
  %v1340 = vand.u32 2147483647, %v1081
  %vm1341 = vcmp.lt.f32.partialorder %v1340, 0.0004427343
  %v1342 = vsel %vm1341, %v1339, %v1336
  %v1343 = vadd.f32 %v1083, 1.0
  %v1344 = vlog2.pop %v1343
  %v1345 = vmul.f32 %v1344, 0.6931472
  %v1346 = vmul.f32 -0.5, %v1083
  %v1347 = vadd.f32 %v1346, 1.0
  %v1348 = vmul.f32 %v1347, %v1083
  %v1349 = vand.u32 2147483647, %v1083
  %vm1350 = vcmp.lt.f32.partialorder %v1349, 0.0004427343
  %v1351 = vsel %vm1350, %v1348, %v1345
  %v1352 = vadd.f32 %v1085, 1.0
  %v1353 = vlog2.pop %v1352
  %v1354 = vmul.f32 %v1353, 0.6931472
  %v1355 = vmul.f32 -0.5, %v1085
  %v1356 = vadd.f32 %v1355, 1.0
  %v1357 = vmul.f32 %v1356, %v1085
  %v1358 = vand.u32 2147483647, %v1085
  %vm1359 = vcmp.lt.f32.partialorder %v1358, 0.0004427343
  %v1360 = vsel %vm1359, %v1357, %v1354
  %v1361 = vadd.f32 %v1087, 1.0
  %v1362 = vlog2.pop %v1361
  %v1363 = vmul.f32 %v1362, 0.6931472
  %v1364 = vmul.f32 -0.5, %v1087
  %v1365 = vadd.f32 %v1364, 1.0
  %v1366 = vmul.f32 %v1365, %v1087
  %v1367 = vand.u32 2147483647, %v1087
  %vm1368 = vcmp.lt.f32.partialorder %v1367, 0.0004427343
  %v1369 = vsel %vm1368, %v1366, %v1363
  %v1370 = vadd.f32 %v1089, 1.0
  %v1371 = vlog2.pop %v1370
  %v1372 = vmul.f32 %v1371, 0.6931472
  %v1373 = vmul.f32 -0.5, %v1089
  %v1374 = vadd.f32 %v1373, 1.0
  %v1375 = vmul.f32 %v1374, %v1089
  %v1376 = vand.u32 2147483647, %v1089
  %vm1377 = vcmp.lt.f32.partialorder %v1376, 0.0004427343
  %v1378 = vsel %vm1377, %v1375, %v1372
  %v1379 = vadd.f32 %v1091, 1.0
  %v1380 = vlog2.pop %v1379
  %v1381 = vmul.f32 %v1380, 0.6931472
  %v1382 = vmul.f32 -0.5, %v1091
  %v1383 = vadd.f32 %v1382, 1.0
  %v1384 = vmul.f32 %v1383, %v1091
  %v1385 = vand.u32 2147483647, %v1091
  %vm1386 = vcmp.lt.f32.partialorder %v1385, 0.0004427343
  %v1387 = vsel %vm1386, %v1384, %v1381
  %v1388 = vadd.f32 %v1093, 1.0
  %v1389 = vlog2.pop %v1388
  %v1390 = vmul.f32 %v1389, 0.6931472
  %v1391 = vmul.f32 -0.5, %v1093
  %v1392 = vadd.f32 %v1391, 1.0
  %v1393 = vmul.f32 %v1392, %v1093
  %v1394 = vand.u32 2147483647, %v1093
  %vm1395 = vcmp.lt.f32.partialorder %v1394, 0.0004427343
  %v1396 = vsel %vm1395, %v1393, %v1390
  %v1397 = vadd.f32 %v1095, 1.0
  %v1398 = vlog2.pop %v1397
  %v1399 = vmul.f32 %v1398, 0.6931472
  %v1400 = vmul.f32 -0.5, %v1095
  %v1401 = vadd.f32 %v1400, 1.0
  %v1402 = vmul.f32 %v1401, %v1095
  %v1403 = vand.u32 2147483647, %v1095
  %vm1404 = vcmp.lt.f32.partialorder %v1403, 0.0004427343
  %v1405 = vsel %vm1404, %v1402, %v1399
  %v1406 = vadd.f32 %v1097, 1.0
  %v1407 = vlog2.pop %v1406
  %v1408 = vmul.f32 %v1407, 0.6931472
  %v1409 = vmul.f32 -0.5, %v1097
  %v1410 = vadd.f32 %v1409, 1.0
  %v1411 = vmul.f32 %v1410, %v1097
  %v1412 = vand.u32 2147483647, %v1097
  %vm1413 = vcmp.lt.f32.partialorder %v1412, 0.0004427343
  %v1414 = vsel %vm1413, %v1411, %v1408
  %v1415 = vadd.f32 %v1099, 1.0
  %v1416 = vlog2.pop %v1415
  %v1417 = vmul.f32 %v1416, 0.6931472
  %v1418 = vmul.f32 -0.5, %v1099
  %v1419 = vadd.f32 %v1418, 1.0
  %v1420 = vmul.f32 %v1419, %v1099
  %v1421 = vand.u32 2147483647, %v1099
  %vm1422 = vcmp.lt.f32.partialorder %v1421, 0.0004427343
  %v1423 = vsel %vm1422, %v1420, %v1417
  %v1424 = vadd.f32 %v1101, 1.0
  %v1425 = vlog2.pop %v1424
  %v1426 = vmul.f32 %v1425, 0.6931472
  %v1427 = vmul.f32 -0.5, %v1101
  %v1428 = vadd.f32 %v1427, 1.0
  %v1429 = vmul.f32 %v1428, %v1101
  %v1430 = vand.u32 2147483647, %v1101
  %vm1431 = vcmp.lt.f32.partialorder %v1430, 0.0004427343
  %v1432 = vsel %vm1431, %v1429, %v1426
  %v1433 = vadd.f32 %v1103, 1.0
  %v1434 = vlog2.pop %v1433
  %v1435 = vmul.f32 %v1434, 0.6931472
  %v1436 = vmul.f32 -0.5, %v1103
  %v1437 = vadd.f32 %v1436, 1.0
  %v1438 = vmul.f32 %v1437, %v1103
  %v1439 = vand.u32 2147483647, %v1103
  %vm1440 = vcmp.lt.f32.partialorder %v1439, 0.0004427343
  %v1441 = vsel %vm1440, %v1438, %v1435
  %v1442 = vadd.f32 %v1105, 1.0
  %v1443 = vlog2.pop %v1442
  %v1444 = vmul.f32 %v1443, 0.6931472
  %v1445 = vmul.f32 -0.5, %v1105
  %v1446 = vadd.f32 %v1445, 1.0
  %v1447 = vmul.f32 %v1446, %v1105
  %v1448 = vand.u32 2147483647, %v1105
  %vm1449 = vcmp.lt.f32.partialorder %v1448, 0.0004427343
  %v1450 = vsel %vm1449, %v1447, %v1444
  %v1451 = vadd.f32 %v1107, 1.0
  %v1452 = vlog2.pop %v1451
  %v1453 = vmul.f32 %v1452, 0.6931472
  %v1454 = vmul.f32 -0.5, %v1107
  %v1455 = vadd.f32 %v1454, 1.0
  %v1456 = vmul.f32 %v1455, %v1107
  %v1457 = vand.u32 2147483647, %v1107
  %vm1458 = vcmp.lt.f32.partialorder %v1457, 0.0004427343
  %v1459 = vsel %vm1458, %v1456, %v1453
  %v1460 = vadd.f32 %v1109, 1.0
  %v1461 = vlog2.pop %v1460
  %v1462 = vmul.f32 %v1461, 0.6931472
  %v1463 = vmul.f32 -0.5, %v1109
  %v1464 = vadd.f32 %v1463, 1.0
  %v1465 = vmul.f32 %v1464, %v1109
  %v1466 = vand.u32 2147483647, %v1109
  %vm1467 = vcmp.lt.f32.partialorder %v1466, 0.0004427343
  %v1468 = vsel %vm1467, %v1465, %v1462
  %v1469 = vadd.f32 %v1111, 1.0
  %v1470 = vlog2.pop %v1469
  %v1471 = vmul.f32 %v1470, 0.6931472
  %v1472 = vmul.f32 -0.5, %v1111
  %v1473 = vadd.f32 %v1472, 1.0
  %v1474 = vmul.f32 %v1473, %v1111
  %v1475 = vand.u32 2147483647, %v1111
  %vm1476 = vcmp.lt.f32.partialorder %v1475, 0.0004427343
  %v1477 = vsel %vm1476, %v1474, %v1471
  %v1478 = vadd.f32 %v1113, 1.0
  %v1479 = vlog2.pop %v1478
  %v1480 = vmul.f32 %v1479, 0.6931472
  %v1481 = vmul.f32 -0.5, %v1113
  %v1482 = vadd.f32 %v1481, 1.0
  %v1483 = vmul.f32 %v1482, %v1113
  %v1484 = vand.u32 2147483647, %v1113
  %vm1485 = vcmp.lt.f32.partialorder %v1484, 0.0004427343
  %v1486 = vsel %vm1485, %v1483, %v1480
  %v1487 = vadd.f32 %v1115, 1.0
  %v1488 = vlog2.pop %v1487
  %v1489 = vmul.f32 %v1488, 0.6931472
  %v1490 = vmul.f32 -0.5, %v1115
  %v1491 = vadd.f32 %v1490, 1.0
  %v1492 = vmul.f32 %v1491, %v1115
  %v1493 = vand.u32 2147483647, %v1115
  %vm1494 = vcmp.lt.f32.partialorder %v1493, 0.0004427343
  %v1495 = vsel %vm1494, %v1492, %v1489
  %v1496 = vadd.f32 %v1117, 1.0
  %v1497 = vlog2.pop %v1496
  %v1498 = vmul.f32 %v1497, 0.6931472
  %v1499 = vmul.f32 -0.5, %v1117
  %v1500 = vadd.f32 %v1499, 1.0
  %v1501 = vmul.f32 %v1500, %v1117
  %v1502 = vand.u32 2147483647, %v1117
  %vm1503 = vcmp.lt.f32.partialorder %v1502, 0.0004427343
  %v1504 = vsel %vm1503, %v1501, %v1498
  %v1505 = vadd.f32 %v1119, 1.0
  %v1506 = vlog2.pop %v1505
  %v1507 = vmul.f32 %v1506, 0.6931472
  %v1508 = vmul.f32 -0.5, %v1119
  %v1509 = vadd.f32 %v1508, 1.0
  %v1510 = vmul.f32 %v1509, %v1119
  %v1511 = vand.u32 2147483647, %v1119
  %vm1512 = vcmp.lt.f32.partialorder %v1511, 0.0004427343
  %v1513 = vsel %vm1512, %v1510, %v1507
  %v1514 = vadd.f32 %v1121, 1.0
  %v1515 = vlog2.pop %v1514
  %v1516 = vmul.f32 %v1515, 0.6931472
  %v1517 = vmul.f32 -0.5, %v1121
  %v1518 = vadd.f32 %v1517, 1.0
  %v1519 = vmul.f32 %v1518, %v1121
  %v1520 = vand.u32 2147483647, %v1121
  %vm1521 = vcmp.lt.f32.partialorder %v1520, 0.0004427343
  %v1522 = vsel %vm1521, %v1519, %v1516
  %v1523 = vadd.f32 %v1123, 1.0
  %v1524 = vlog2.pop %v1523
  %v1525 = vmul.f32 %v1524, 0.6931472
  %v1526 = vmul.f32 -0.5, %v1123
  %v1527 = vadd.f32 %v1526, 1.0
  %v1528 = vmul.f32 %v1527, %v1123
  %v1529 = vand.u32 2147483647, %v1123
  %vm1530 = vcmp.lt.f32.partialorder %v1529, 0.0004427343
  %v1531 = vsel %vm1530, %v1528, %v1525
  %v1532 = vadd.f32 %v1125, 1.0
  %v1533 = vlog2.pop %v1532
  %v1534 = vmul.f32 %v1533, 0.6931472
  %v1535 = vmul.f32 -0.5, %v1125
  %v1536 = vadd.f32 %v1535, 1.0
  %v1537 = vmul.f32 %v1536, %v1125
  %v1538 = vand.u32 2147483647, %v1125
  %vm1539 = vcmp.lt.f32.partialorder %v1538, 0.0004427343
  %v1540 = vsel %vm1539, %v1537, %v1534
  %v1541 = vadd.f32 %v1127, 1.0
  %v1542 = vlog2.pop %v1541
  %v1543 = vmul.f32 %v1542, 0.6931472
  %v1544 = vmul.f32 -0.5, %v1127
  %v1545 = vadd.f32 %v1544, 1.0
  %v1546 = vmul.f32 %v1545, %v1127
  %v1547 = vand.u32 2147483647, %v1127
  %vm1548 = vcmp.lt.f32.partialorder %v1547, 0.0004427343
  %v1549 = vsel %vm1548, %v1546, %v1543
  %v1550 = vadd.f32 %v1129, 1.0
  %v1551 = vlog2.pop %v1550
  %v1552 = vmul.f32 %v1551, 0.6931472
  %v1553 = vmul.f32 -0.5, %v1129
  %v1554 = vadd.f32 %v1553, 1.0
  %v1555 = vmul.f32 %v1554, %v1129
  %v1556 = vand.u32 2147483647, %v1129
  %vm1557 = vcmp.lt.f32.partialorder %v1556, 0.0004427343
  %v1558 = vsel %vm1557, %v1555, %v1552
  %v1559 = vadd.f32 %v1131, 1.0
  %v1560 = vlog2.pop %v1559
  %v1561 = vmul.f32 %v1560, 0.6931472
  %v1562 = vmul.f32 -0.5, %v1131
  %v1563 = vadd.f32 %v1562, 1.0
  %v1564 = vmul.f32 %v1563, %v1131
  %v1565 = vand.u32 2147483647, %v1131
  %vm1566 = vcmp.lt.f32.partialorder %v1565, 0.0004427343
  %v1567 = vsel %vm1566, %v1564, %v1561
  %v1568 = vadd.f32 %v1133, 1.0
  %v1569 = vlog2.pop %v1568
  %v1570 = vmul.f32 %v1569, 0.6931472
  %v1571 = vmul.f32 -0.5, %v1133
  %v1572 = vadd.f32 %v1571, 1.0
  %v1573 = vmul.f32 %v1572, %v1133
  %v1574 = vand.u32 2147483647, %v1133
  %vm1575 = vcmp.lt.f32.partialorder %v1574, 0.0004427343
  %v1576 = vsel %vm1575, %v1573, %v1570
  %v1577 = vadd.f32 %v1135, 1.0
  %v1578 = vlog2.pop %v1577
  %v1579 = vmul.f32 %v1578, 0.6931472
  %v1580 = vmul.f32 -0.5, %v1135
  %v1581 = vadd.f32 %v1580, 1.0
  %v1582 = vmul.f32 %v1581, %v1135
  %v1583 = vand.u32 2147483647, %v1135
  %vm1584 = vcmp.lt.f32.partialorder %v1583, 0.0004427343
  %v1585 = vsel %vm1584, %v1582, %v1579
  %v1586 = vadd.f32 %v1137, 1.0
  %v1587 = vlog2.pop %v1586
  %v1588 = vmul.f32 %v1587, 0.6931472
  %v1589 = vmul.f32 -0.5, %v1137
  %v1590 = vadd.f32 %v1589, 1.0
  %v1591 = vmul.f32 %v1590, %v1137
  %v1592 = vand.u32 2147483647, %v1137
  %vm1593 = vcmp.lt.f32.partialorder %v1592, 0.0004427343
  %v1594 = vsel %vm1593, %v1591, %v1588
  %v1595 = vadd.f32 %v1139, 1.0
  %v1596 = vlog2.pop %v1595
  %v1597 = vmul.f32 %v1596, 0.6931472
  %v1598 = vmul.f32 -0.5, %v1139
  %v1599 = vadd.f32 %v1598, 1.0
  %v1600 = vmul.f32 %v1599, %v1139
  %v1601 = vand.u32 2147483647, %v1139
  %vm1602 = vcmp.lt.f32.partialorder %v1601, 0.0004427343
  %v1603 = vsel %vm1602, %v1600, %v1597
  %v1604 = vadd.f32 %v1141, 1.0
  %v1605 = vlog2.pop %v1604
  %v1606 = vmul.f32 %v1605, 0.6931472
  %v1607 = vmul.f32 -0.5, %v1141
  %v1608 = vadd.f32 %v1607, 1.0
  %v1609 = vmul.f32 %v1608, %v1141
  %v1610 = vand.u32 2147483647, %v1141
  %vm1611 = vcmp.lt.f32.partialorder %v1610, 0.0004427343
  %v1612 = vsel %vm1611, %v1609, %v1606
  %v1613 = vadd.f32 %v1143, 1.0
  %v1614 = vlog2.pop %v1613
  %v1615 = vmul.f32 %v1614, 0.6931472
  %v1616 = vmul.f32 -0.5, %v1143
  %v1617 = vadd.f32 %v1616, 1.0
  %v1618 = vmul.f32 %v1617, %v1143
  %v1619 = vand.u32 2147483647, %v1143
  %vm1620 = vcmp.lt.f32.partialorder %v1619, 0.0004427343
  %v1621 = vsel %vm1620, %v1618, %v1615
  %v1622 = vadd.f32 %v1145, 1.0
  %v1623 = vlog2.pop %v1622
  %v1624 = vmul.f32 %v1623, 0.6931472
  %v1625 = vmul.f32 -0.5, %v1145
  %v1626 = vadd.f32 %v1625, 1.0
  %v1627 = vmul.f32 %v1626, %v1145
  %v1628 = vand.u32 2147483647, %v1145
  %vm1629 = vcmp.lt.f32.partialorder %v1628, 0.0004427343
  %v1630 = vsel %vm1629, %v1627, %v1624
  %v1631 = vadd.f32 %v1147, 1.0
  %v1632 = vlog2.pop %v1631
  %v1633 = vmul.f32 %v1632, 0.6931472
  %v1634 = vmul.f32 -0.5, %v1147
  %v1635 = vadd.f32 %v1634, 1.0
  %v1636 = vmul.f32 %v1635, %v1147
  %v1637 = vand.u32 2147483647, %v1147
  %vm1638 = vcmp.lt.f32.partialorder %v1637, 0.0004427343
  %v1639 = vsel %vm1638, %v1636, %v1633
  %v1640 = vadd.f32 %v1149, 1.0
  %v1641 = vlog2.pop %v1640
  %v1642 = vmul.f32 %v1641, 0.6931472
  %v1643 = vmul.f32 -0.5, %v1149
  %v1644 = vadd.f32 %v1643, 1.0
  %v1645 = vmul.f32 %v1644, %v1149
  %v1646 = vand.u32 2147483647, %v1149
  %vm1647 = vcmp.lt.f32.partialorder %v1646, 0.0004427343
  %v1648 = vsel %vm1647, %v1645, %v1642
  %v1649 = vadd.f32 %v1151, 1.0
  %v1650 = vlog2.pop %v1649
  %v1651 = vmul.f32 %v1650, 0.6931472
  %v1652 = vmul.f32 -0.5, %v1151
  %v1653 = vadd.f32 %v1652, 1.0
  %v1654 = vmul.f32 %v1653, %v1151
  %v1655 = vand.u32 2147483647, %v1151
  %vm1656 = vcmp.lt.f32.partialorder %v1655, 0.0004427343
  %v1657 = vsel %vm1656, %v1654, %v1651
  %v1658 = vadd.f32 %v1153, 1.0
  %v1659 = vlog2.pop %v1658
  %v1660 = vmul.f32 %v1659, 0.6931472
  %v1661 = vmul.f32 -0.5, %v1153
  %v1662 = vadd.f32 %v1661, 1.0
  %v1663 = vmul.f32 %v1662, %v1153
  %v1664 = vand.u32 2147483647, %v1153
  %vm1665 = vcmp.lt.f32.partialorder %v1664, 0.0004427343
  %v1666 = vsel %vm1665, %v1663, %v1660
  %v1667 = vadd.f32 %v1155, 1.0
  %v1668 = vlog2.pop %v1667
  %v1669 = vmul.f32 %v1668, 0.6931472
  %v1670 = vmul.f32 -0.5, %v1155
  %v1671 = vadd.f32 %v1670, 1.0
  %v1672 = vmul.f32 %v1671, %v1155
  %v1673 = vand.u32 2147483647, %v1155
  %vm1674 = vcmp.lt.f32.partialorder %v1673, 0.0004427343
  %v1675 = vsel %vm1674, %v1672, %v1669
  %v1676 = vadd.f32 %v1157, 1.0
  %v1677 = vlog2.pop %v1676
  %v1678 = vmul.f32 %v1677, 0.6931472
  %v1679 = vmul.f32 -0.5, %v1157
  %v1680 = vadd.f32 %v1679, 1.0
  %v1681 = vmul.f32 %v1680, %v1157
  %v1682 = vand.u32 2147483647, %v1157
  %vm1683 = vcmp.lt.f32.partialorder %v1682, 0.0004427343
  %v1684 = vsel %vm1683, %v1681, %v1678
  %v1685 = vadd.f32 %v1159, 1.0
  %v1686 = vlog2.pop %v1685
  %v1687 = vmul.f32 %v1686, 0.6931472
  %v1688 = vmul.f32 -0.5, %v1159
  %v1689 = vadd.f32 %v1688, 1.0
  %v1690 = vmul.f32 %v1689, %v1159
  %v1691 = vand.u32 2147483647, %v1159
  %vm1692 = vcmp.lt.f32.partialorder %v1691, 0.0004427343
  %v1693 = vsel %vm1692, %v1690, %v1687
  %v1694 = vadd.f32 %v1161, 1.0
  %v1695 = vlog2.pop %v1694
  %v1696 = vmul.f32 %v1695, 0.6931472
  %v1697 = vmul.f32 -0.5, %v1161
  %v1698 = vadd.f32 %v1697, 1.0
  %v1699 = vmul.f32 %v1698, %v1161
  %v1700 = vand.u32 2147483647, %v1161
  %vm1701 = vcmp.lt.f32.partialorder %v1700, 0.0004427343
  %v1702 = vsel %vm1701, %v1699, %v1696
  %v1703 = vadd.f32 %v1163, 1.0
  %v1704 = vlog2.pop %v1703
  %v1705 = vmul.f32 %v1704, 0.6931472
  %v1706 = vmul.f32 -0.5, %v1163
  %v1707 = vadd.f32 %v1706, 1.0
  %v1708 = vmul.f32 %v1707, %v1163
  %v1709 = vand.u32 2147483647, %v1163
  %vm1710 = vcmp.lt.f32.partialorder %v1709, 0.0004427343
  %v1711 = vsel %vm1710, %v1708, %v1705
  %v1712 = vadd.f32 %v1165, 1.0
  %v1713 = vlog2.pop %v1712
  %v1714 = vmul.f32 %v1713, 0.6931472
  %v1715 = vmul.f32 -0.5, %v1165
  %v1716 = vadd.f32 %v1715, 1.0
  %v1717 = vmul.f32 %v1716, %v1165
  %v1718 = vand.u32 2147483647, %v1165
  %vm1719 = vcmp.lt.f32.partialorder %v1718, 0.0004427343
  %v1720 = vsel %vm1719, %v1717, %v1714
  %v1721 = vadd.f32 %v1167, 1.0
  %v1722 = vlog2.pop %v1721
  %v1723 = vmul.f32 %v1722, 0.6931472
  %v1724 = vmul.f32 -0.5, %v1167
  %v1725 = vadd.f32 %v1724, 1.0
  %v1726 = vmul.f32 %v1725, %v1167
  %v1727 = vand.u32 2147483647, %v1167
  %vm1728 = vcmp.lt.f32.partialorder %v1727, 0.0004427343
  %v1729 = vsel %vm1728, %v1726, %v1723
  %v1730 = vadd.f32 %v1169, 1.0
  %v1731 = vlog2.pop %v1730
  %v1732 = vmul.f32 %v1731, 0.6931472
  %v1733 = vmul.f32 -0.5, %v1169
  %v1734 = vadd.f32 %v1733, 1.0
  %v1735 = vmul.f32 %v1734, %v1169
  %v1736 = vand.u32 2147483647, %v1169
  %vm1737 = vcmp.lt.f32.partialorder %v1736, 0.0004427343
  %v1738 = vsel %vm1737, %v1735, %v1732
  %v1739 = vadd.f32 %v1171, 1.0
  %v1740 = vlog2.pop %v1739
  %v1741 = vmul.f32 %v1740, 0.6931472
  %v1742 = vmul.f32 -0.5, %v1171
  %v1743 = vadd.f32 %v1742, 1.0
  %v1744 = vmul.f32 %v1743, %v1171
  %v1745 = vand.u32 2147483647, %v1171
  %vm1746 = vcmp.lt.f32.partialorder %v1745, 0.0004427343
  %v1747 = vsel %vm1746, %v1744, %v1741
  %v1748 = vsel %vm916, %v852, %v1180
  %v1749 = vsel %vm917, %v853, %v1189
  %v1750 = vsel %vm918, %v854, %v1198
  %v1751 = vsel %vm919, %v855, %v1207
  %v1752 = vsel %vm920, %v856, %v1216
  %v1753 = vsel %vm921, %v857, %v1225
  %v1754 = vsel %vm922, %v858, %v1234
  %v1755 = vsel %vm923, %v859, %v1243
  %v1756 = vsel %vm924, %v860, %v1252
  %v1757 = vsel %vm925, %v861, %v1261
  %v1758 = vsel %vm926, %v862, %v1270
  %v1759 = vsel %vm927, %v863, %v1279
  %v1760 = vsel %vm928, %v864, %v1288
  %v1761 = vsel %vm929, %v865, %v1297
  %v1762 = vsel %vm930, %v866, %v1306
  %v1763 = vsel %vm931, %v867, %v1315
  %v1764 = vsel %vm932, %v868, %v1324
  %v1765 = vsel %vm933, %v869, %v1333
  %v1766 = vsel %vm934, %v870, %v1342
  %v1767 = vsel %vm935, %v871, %v1351
  %v1768 = vsel %vm936, %v872, %v1360
  %v1769 = vsel %vm937, %v873, %v1369
  %v1770 = vsel %vm938, %v874, %v1378
  %v1771 = vsel %vm939, %v875, %v1387
  %v1772 = vsel %vm940, %v876, %v1396
  %v1773 = vsel %vm941, %v877, %v1405
  %v1774 = vsel %vm942, %v878, %v1414
  %v1775 = vsel %vm943, %v879, %v1423
  %v1776 = vsel %vm944, %v880, %v1432
  %v1777 = vsel %vm945, %v881, %v1441
  %v1778 = vsel %vm946, %v882, %v1450
  %v1779 = vsel %vm947, %v883, %v1459
  %v1780 = vsel %vm948, %v884, %v1468
  %v1781 = vsel %vm949, %v885, %v1477
  %v1782 = vsel %vm950, %v886, %v1486
  %v1783 = vsel %vm951, %v887, %v1495
  %v1784 = vsel %vm952, %v888, %v1504
  %v1785 = vsel %vm953, %v889, %v1513
  %v1786 = vsel %vm954, %v890, %v1522
  %v1787 = vsel %vm955, %v891, %v1531
  %v1788 = vsel %vm956, %v892, %v1540
  %v1789 = vsel %vm957, %v893, %v1549
  %v1790 = vsel %vm958, %v894, %v1558
  %v1791 = vsel %vm959, %v895, %v1567
  %v1792 = vsel %vm960, %v896, %v1576
  %v1793 = vsel %vm961, %v897, %v1585
  %v1794 = vsel %vm962, %v898, %v1594
  %v1795 = vsel %vm963, %v899, %v1603
  %v1796 = vsel %vm964, %v900, %v1612
  %v1797 = vsel %vm965, %v901, %v1621
  %v1798 = vsel %vm966, %v902, %v1630
  %v1799 = vsel %vm967, %v903, %v1639
  %v1800 = vsel %vm968, %v904, %v1648
  %v1801 = vsel %vm969, %v905, %v1657
  %v1802 = vsel %vm970, %v906, %v1666
  %v1803 = vsel %vm971, %v907, %v1675
  %v1804 = vsel %vm972, %v908, %v1684
  %v1805 = vsel %vm973, %v909, %v1693
  %v1806 = vsel %vm974, %v910, %v1702
  %v1807 = vsel %vm975, %v911, %v1711
  %v1808 = vsel %vm976, %v912, %v1720
  %v1809 = vsel %vm977, %v913, %v1729
  %v1810 = vsel %vm978, %v914, %v1738
  %v1811 = vsel %vm979, %v915, %v1747
  %v1812 = vmul.f32 %v406, %v1748
  %v1813 = vmul.f32 %v410, %v1749
  %v1814 = vmul.f32 %v416, %v1750
  %v1815 = vmul.f32 %v420, %v1751
  %v1816 = vmul.f32 %v426, %v1752
  %v1817 = vmul.f32 %v430, %v1753
  %v1818 = vmul.f32 %v436, %v1754
  %v1819 = vmul.f32 %v440, %v1755
  %v1820 = vmul.f32 %v446, %v1756
  %v1821 = vmul.f32 %v450, %v1757
  %v1822 = vmul.f32 %v456, %v1758
  %v1823 = vmul.f32 %v460, %v1759
  %v1824 = vmul.f32 %v466, %v1760
  %v1825 = vmul.f32 %v470, %v1761
  %v1826 = vmul.f32 %v476, %v1762
  %v1827 = vmul.f32 %v480, %v1763
  %v1828 = vmul.f32 %v486, %v1764
  %v1829 = vmul.f32 %v490, %v1765
  %v1830 = vmul.f32 %v496, %v1766
  %v1831 = vmul.f32 %v500, %v1767
  %v1832 = vmul.f32 %v506, %v1768
  %v1833 = vmul.f32 %v510, %v1769
  %v1834 = vmul.f32 %v516, %v1770
  %v1835 = vmul.f32 %v520, %v1771
  %v1836 = vmul.f32 %v526, %v1772
  %v1837 = vmul.f32 %v530, %v1773
  %v1838 = vmul.f32 %v536, %v1774
  %v1839 = vmul.f32 %v540, %v1775
  %v1840 = vmul.f32 %v546, %v1776
  %v1841 = vmul.f32 %v550, %v1777
  %v1842 = vmul.f32 %v556, %v1778
  %v1843 = vmul.f32 %v560, %v1779
  %v1844 = vmul.f32 %v566, %v1780
  %v1845 = vmul.f32 %v570, %v1781
  %v1846 = vmul.f32 %v576, %v1782
  %v1847 = vmul.f32 %v580, %v1783
  %v1848 = vmul.f32 %v586, %v1784
  %v1849 = vmul.f32 %v590, %v1785
  %v1850 = vmul.f32 %v596, %v1786
  %v1851 = vmul.f32 %v600, %v1787
  %v1852 = vmul.f32 %v606, %v1788
  %v1853 = vmul.f32 %v610, %v1789
  %v1854 = vmul.f32 %v616, %v1790
  %v1855 = vmul.f32 %v620, %v1791
  %v1856 = vmul.f32 %v626, %v1792
  %v1857 = vmul.f32 %v630, %v1793
  %v1858 = vmul.f32 %v636, %v1794
  %v1859 = vmul.f32 %v640, %v1795
  %v1860 = vmul.f32 %v646, %v1796
  %v1861 = vmul.f32 %v650, %v1797
  %v1862 = vmul.f32 %v656, %v1798
  %v1863 = vmul.f32 %v660, %v1799
  %v1864 = vmul.f32 %v666, %v1800
  %v1865 = vmul.f32 %v670, %v1801
  %v1866 = vmul.f32 %v676, %v1802
  %v1867 = vmul.f32 %v680, %v1803
  %v1868 = vmul.f32 %v686, %v1804
  %v1869 = vmul.f32 %v690, %v1805
  %v1870 = vmul.f32 %v696, %v1806
  %v1871 = vmul.f32 %v700, %v1807
  %v1872 = vmul.f32 %v706, %v1808
  %v1873 = vmul.f32 %v710, %v1809
  %v1874 = vmul.f32 %v716, %v1810
  %v1875 = vmul.f32 %v720, %v1811
  %v1876 = vadd.f32 %v1812, %v1813
  %v1877 = vadd.f32 %v1876, %v1814
  %v1878 = vadd.f32 %v1877, %v1815
  %v1879 = vadd.f32 %v1878, %v1816
  %v1880 = vadd.f32 %v1879, %v1817
  %v1881 = vadd.f32 %v1880, %v1818
  %v1882 = vadd.f32 %v1881, %v1819
  %v1883 = vadd.f32 %v1882, %v1820
  %v1884 = vadd.f32 %v1883, %v1821
  %v1885 = vadd.f32 %v1884, %v1822
  %v1886 = vadd.f32 %v1885, %v1823
  %v1887 = vadd.f32 %v1886, %v1824
  %v1888 = vadd.f32 %v1887, %v1825
  %v1889 = vadd.f32 %v1888, %v1826
  %v1890 = vadd.f32 %v1889, %v1827
  %v1891 = vadd.f32 %v1890, %v1828
  %v1892 = vadd.f32 %v1891, %v1829
  %v1893 = vadd.f32 %v1892, %v1830
  %v1894 = vadd.f32 %v1893, %v1831
  %v1895 = vadd.f32 %v1894, %v1832
  %v1896 = vadd.f32 %v1895, %v1833
  %v1897 = vadd.f32 %v1896, %v1834
  %v1898 = vadd.f32 %v1897, %v1835
  %v1899 = vadd.f32 %v1898, %v1836
  %v1900 = vadd.f32 %v1899, %v1837
  %v1901 = vadd.f32 %v1900, %v1838
  %v1902 = vadd.f32 %v1901, %v1839
  %v1903 = vadd.f32 %v1902, %v1840
  %v1904 = vadd.f32 %v1903, %v1841
  %v1905 = vadd.f32 %v1904, %v1842
  %v1906 = vadd.f32 %v1905, %v1843
  %v1907 = vadd.f32 %v1906, %v1844
  %v1908 = vadd.f32 %v1907, %v1845
  %v1909 = vadd.f32 %v1908, %v1846
  %v1910 = vadd.f32 %v1909, %v1847
  %v1911 = vadd.f32 %v1910, %v1848
  %v1912 = vadd.f32 %v1911, %v1849
  %v1913 = vadd.f32 %v1912, %v1850
  %v1914 = vadd.f32 %v1913, %v1851
  %v1915 = vadd.f32 %v1914, %v1852
  %v1916 = vadd.f32 %v1915, %v1853
  %v1917 = vadd.f32 %v1916, %v1854
  %v1918 = vadd.f32 %v1917, %v1855
  %v1919 = vadd.f32 %v1918, %v1856
  %v1920 = vadd.f32 %v1919, %v1857
  %v1921 = vadd.f32 %v1920, %v1858
  %v1922 = vadd.f32 %v1921, %v1859
  %v1923 = vadd.f32 %v1922, %v1860
  %v1924 = vadd.f32 %v1923, %v1861
  %v1925 = vadd.f32 %v1924, %v1862
  %v1926 = vadd.f32 %v1925, %v1863
  %v1927 = vadd.f32 %v1926, %v1864
  %v1928 = vadd.f32 %v1927, %v1865
  %v1929 = vadd.f32 %v1928, %v1866
  %v1930 = vadd.f32 %v1929, %v1867
  %v1931 = vadd.f32 %v1930, %v1868
  %v1932 = vadd.f32 %v1931, %v1869
  %v1933 = vadd.f32 %v1932, %v1870
  %v1934 = vadd.f32 %v1933, %v1871
  %v1935 = vadd.f32 %v1934, %v1872
  %v1936 = vadd.f32 %v1935, %v1873
  %v1937 = vadd.f32 %v1936, %v1874
  %v1938 = vadd.f32 %v1937, %v1875
  %v1939 = vrot.slane %v1938, 4
  %v1940 = vadd.f32 %v1938, %v1939
  %v1941 = vrot.slane %v1940, 2
  %v1942 = vadd.f32 %v1940, %v1941
  %v1943 = vrot.slane %v1942, 1
  %v1944 = vadd.f32 %v1942, %v1943
  %1945 = vst [vmem:[%s5] sm:$0x1] %v1944
  %v1946 = vmul.f32 %v1812, %v1812
  %v1947 = vmul.f32 %v1813, %v1813
  %v1948 = vmul.f32 %v1814, %v1814
  %v1949 = vmul.f32 %v1815, %v1815
  %v1950 = vmul.f32 %v1816, %v1816
  %v1951 = vmul.f32 %v1817, %v1817
  %v1952 = vmul.f32 %v1818, %v1818
  %v1953 = vmul.f32 %v1819, %v1819
  %v1954 = vmul.f32 %v1820, %v1820
  %v1955 = vmul.f32 %v1821, %v1821
  %v1956 = vmul.f32 %v1822, %v1822
  %v1957 = vmul.f32 %v1823, %v1823
  %v1958 = vmul.f32 %v1824, %v1824
  %v1959 = vmul.f32 %v1825, %v1825
  %v1960 = vmul.f32 %v1826, %v1826
  %v1961 = vmul.f32 %v1827, %v1827
  %v1962 = vmul.f32 %v1828, %v1828
  %v1963 = vmul.f32 %v1829, %v1829
  %v1964 = vmul.f32 %v1830, %v1830
  %v1965 = vmul.f32 %v1831, %v1831
  %v1966 = vmul.f32 %v1832, %v1832
  %v1967 = vmul.f32 %v1833, %v1833
  %v1968 = vmul.f32 %v1834, %v1834
  %v1969 = vmul.f32 %v1835, %v1835
  %v1970 = vmul.f32 %v1836, %v1836
  %v1971 = vmul.f32 %v1837, %v1837
  %v1972 = vmul.f32 %v1838, %v1838
  %v1973 = vmul.f32 %v1839, %v1839
  %v1974 = vmul.f32 %v1840, %v1840
  %v1975 = vmul.f32 %v1841, %v1841
  %v1976 = vmul.f32 %v1842, %v1842
  %v1977 = vmul.f32 %v1843, %v1843
  %v1978 = vmul.f32 %v1844, %v1844
  %v1979 = vmul.f32 %v1845, %v1845
  %v1980 = vmul.f32 %v1846, %v1846
  %v1981 = vmul.f32 %v1847, %v1847
  %v1982 = vmul.f32 %v1848, %v1848
  %v1983 = vmul.f32 %v1849, %v1849
  %v1984 = vmul.f32 %v1850, %v1850
  %v1985 = vmul.f32 %v1851, %v1851
  %v1986 = vmul.f32 %v1852, %v1852
  %v1987 = vmul.f32 %v1853, %v1853
  %v1988 = vmul.f32 %v1854, %v1854
  %v1989 = vmul.f32 %v1855, %v1855
  %v1990 = vmul.f32 %v1856, %v1856
  %v1991 = vmul.f32 %v1857, %v1857
  %v1992 = vmul.f32 %v1858, %v1858
  %v1993 = vmul.f32 %v1859, %v1859
  %v1994 = vmul.f32 %v1860, %v1860
  %v1995 = vmul.f32 %v1861, %v1861
  %v1996 = vmul.f32 %v1862, %v1862
  %v1997 = vmul.f32 %v1863, %v1863
  %v1998 = vmul.f32 %v1864, %v1864
  %v1999 = vmul.f32 %v1865, %v1865
  %v2000 = vmul.f32 %v1866, %v1866
  %v2001 = vmul.f32 %v1867, %v1867
  %v2002 = vmul.f32 %v1868, %v1868
  %v2003 = vmul.f32 %v1869, %v1869
  %v2004 = vmul.f32 %v1870, %v1870
  %v2005 = vmul.f32 %v1871, %v1871
  %v2006 = vmul.f32 %v1872, %v1872
  %v2007 = vmul.f32 %v1873, %v1873
  %v2008 = vmul.f32 %v1874, %v1874
  %v2009 = vmul.f32 %v1875, %v1875
  %v2010 = vadd.f32 %v1946, %v1947
  %v2011 = vadd.f32 %v2010, %v1948
  %v2012 = vadd.f32 %v2011, %v1949
  %v2013 = vadd.f32 %v2012, %v1950
  %v2014 = vadd.f32 %v2013, %v1951
  %v2015 = vadd.f32 %v2014, %v1952
  %v2016 = vadd.f32 %v2015, %v1953
  %v2017 = vadd.f32 %v2016, %v1954
  %v2018 = vadd.f32 %v2017, %v1955
  %v2019 = vadd.f32 %v2018, %v1956
  %v2020 = vadd.f32 %v2019, %v1957
  %v2021 = vadd.f32 %v2020, %v1958
  %v2022 = vadd.f32 %v2021, %v1959
  %v2023 = vadd.f32 %v2022, %v1960
  %v2024 = vadd.f32 %v2023, %v1961
  %v2025 = vadd.f32 %v2024, %v1962
  %v2026 = vadd.f32 %v2025, %v1963
  %v2027 = vadd.f32 %v2026, %v1964
  %v2028 = vadd.f32 %v2027, %v1965
  %v2029 = vadd.f32 %v2028, %v1966
  %v2030 = vadd.f32 %v2029, %v1967
  %v2031 = vadd.f32 %v2030, %v1968
  %v2032 = vadd.f32 %v2031, %v1969
  %v2033 = vadd.f32 %v2032, %v1970
  %v2034 = vadd.f32 %v2033, %v1971
  %v2035 = vadd.f32 %v2034, %v1972
  %v2036 = vadd.f32 %v2035, %v1973
  %v2037 = vadd.f32 %v2036, %v1974
  %v2038 = vadd.f32 %v2037, %v1975
  %v2039 = vadd.f32 %v2038, %v1976
  %v2040 = vadd.f32 %v2039, %v1977
  %v2041 = vadd.f32 %v2040, %v1978
  %v2042 = vadd.f32 %v2041, %v1979
  %v2043 = vadd.f32 %v2042, %v1980
  %v2044 = vadd.f32 %v2043, %v1981
  %v2045 = vadd.f32 %v2044, %v1982
  %v2046 = vadd.f32 %v2045, %v1983
  %v2047 = vadd.f32 %v2046, %v1984
  %v2048 = vadd.f32 %v2047, %v1985
  %v2049 = vadd.f32 %v2048, %v1986
  %v2050 = vadd.f32 %v2049, %v1987
  %v2051 = vadd.f32 %v2050, %v1988
  %v2052 = vadd.f32 %v2051, %v1989
  %v2053 = vadd.f32 %v2052, %v1990
  %v2054 = vadd.f32 %v2053, %v1991
  %v2055 = vadd.f32 %v2054, %v1992
  %v2056 = vadd.f32 %v2055, %v1993
  %v2057 = vadd.f32 %v2056, %v1994
  %v2058 = vadd.f32 %v2057, %v1995
  %v2059 = vadd.f32 %v2058, %v1996
  %v2060 = vadd.f32 %v2059, %v1997
  %v2061 = vadd.f32 %v2060, %v1998
  %v2062 = vadd.f32 %v2061, %v1999
  %v2063 = vadd.f32 %v2062, %v2000
  %v2064 = vadd.f32 %v2063, %v2001
  %v2065 = vadd.f32 %v2064, %v2002
  %v2066 = vadd.f32 %v2065, %v2003
  %v2067 = vadd.f32 %v2066, %v2004
  %v2068 = vadd.f32 %v2067, %v2005
  %v2069 = vadd.f32 %v2068, %v2006
  %v2070 = vadd.f32 %v2069, %v2007
  %v2071 = vadd.f32 %v2070, %v2008
  %v2072 = vadd.f32 %v2071, %v2009
  %v2073 = vrot.slane %v2072, 4
  %v2074 = vadd.f32 %v2072, %v2073
  %v2075 = vrot.slane %v2074, 2
  %v2076 = vadd.f32 %v2074, %v2075
  %v2077 = vrot.slane %v2076, 1
  %v2078 = vadd.f32 %v2076, %v2077
  %2079 = vst [vmem:[%s6] sm:$0x1] %v2078
  %v2080 = vmax.f32 %v1812, %v1828
  %v2081 = vmax.f32 %v1813, %v1829
  %v2082 = vmax.f32 %v1814, %v1830
  %v2083 = vmax.f32 %v1815, %v1831
  %v2084 = vmax.f32 %v1816, %v1832
  %v2085 = vmax.f32 %v1817, %v1833
  %v2086 = vmax.f32 %v1818, %v1834
  %v2087 = vmax.f32 %v1819, %v1835
  %v2088 = vmax.f32 %v1820, %v1836
  %v2089 = vmax.f32 %v1821, %v1837
  %v2090 = vmax.f32 %v1822, %v1838
  %v2091 = vmax.f32 %v1823, %v1839
  %v2092 = vmax.f32 %v1824, %v1840
  %v2093 = vmax.f32 %v1825, %v1841
  %v2094 = vmax.f32 %v1826, %v1842
  %v2095 = vmax.f32 %v1827, %v1843
  %v2096 = vmax.f32 %v1844, %v1860
  %v2097 = vmax.f32 %v1845, %v1861
  %v2098 = vmax.f32 %v1846, %v1862
  %v2099 = vmax.f32 %v1847, %v1863
  %v2100 = vmax.f32 %v1848, %v1864
  %v2101 = vmax.f32 %v1849, %v1865
  %v2102 = vmax.f32 %v1850, %v1866
  %v2103 = vmax.f32 %v1851, %v1867
  %v2104 = vmax.f32 %v1852, %v1868
  %v2105 = vmax.f32 %v1853, %v1869
  %v2106 = vmax.f32 %v1854, %v1870
  %v2107 = vmax.f32 %v1855, %v1871
  %v2108 = vmax.f32 %v1856, %v1872
  %v2109 = vmax.f32 %v1857, %v1873
  %v2110 = vmax.f32 %v1858, %v1874
  %v2111 = vmax.f32 %v1859, %v1875
  %v2112 = vmax.f32 %v2080, %v2096
  %v2113 = vmax.f32 %v2081, %v2097
  %v2114 = vmax.f32 %v2082, %v2098
  %v2115 = vmax.f32 %v2083, %v2099
  %v2116 = vmax.f32 %v2084, %v2100
  %v2117 = vmax.f32 %v2085, %v2101
  %v2118 = vmax.f32 %v2086, %v2102
  %v2119 = vmax.f32 %v2087, %v2103
  %v2120 = vmax.f32 %v2088, %v2104
  %v2121 = vmax.f32 %v2089, %v2105
  %v2122 = vmax.f32 %v2090, %v2106
  %v2123 = vmax.f32 %v2091, %v2107
  %v2124 = vmax.f32 %v2092, %v2108
  %v2125 = vmax.f32 %v2093, %v2109
  %v2126 = vmax.f32 %v2094, %v2110
  %v2127 = vmax.f32 %v2095, %v2111
  %v2128 = vpack.c.bf16 %v2113, %v2112
  %v2129 = vpack.c.bf16 %v2115, %v2114
  %v2130 = vpack.c.bf16 %v2117, %v2116
  %v2131 = vpack.c.bf16 %v2119, %v2118
  %v2132 = vpack.c.bf16 %v2121, %v2120
  %v2133 = vpack.c.bf16 %v2123, %v2122
  %v2134 = vpack.c.bf16 %v2125, %v2124
  %v2135 = vpack.c.bf16 %v2127, %v2126
  %v2144 = vunpack.c.l.b16 %v2128
  %v2145 = vunpack.c.h.b16 %v2128
  %v2146 = vunpack.c.l.b16 %v2129
  %v2147 = vunpack.c.h.b16 %v2129
  %v2148 = vunpack.c.l.b16 %v2130
  %v2149 = vunpack.c.h.b16 %v2130
  %v2150 = vunpack.c.l.b16 %v2131
  %v2151 = vunpack.c.h.b16 %v2131
  %v2152 = vunpack.c.l.b16 %v2132
  %v2153 = vunpack.c.h.b16 %v2132
  %v2154 = vunpack.c.l.b16 %v2133
  %v2155 = vunpack.c.h.b16 %v2133
  %v2156 = vunpack.c.l.b16 %v2134
  %v2157 = vunpack.c.h.b16 %v2134
  %v2158 = vunpack.c.l.b16 %v2135
  %v2159 = vunpack.c.h.b16 %v2135
  %v2160 = vpack.c.b16 %v2144, %v2144
  %v2161 = vpack.c.b16 %v2145, %v2145
  %v2162 = vpack.c.b16 %v2146, %v2146
  %v2163 = vpack.c.b16 %v2147, %v2147
  %v2164 = vpack.c.b16 %v2148, %v2148
  %v2165 = vpack.c.b16 %v2149, %v2149
  %v2166 = vpack.c.b16 %v2150, %v2150
  %v2167 = vpack.c.b16 %v2151, %v2151
  %v2168 = vpack.c.b16 %v2152, %v2152
  %v2169 = vpack.c.b16 %v2153, %v2153
  %v2170 = vpack.c.b16 %v2154, %v2154
  %v2171 = vpack.c.b16 %v2155, %v2155
  %v2172 = vpack.c.b16 %v2156, %v2156
  %v2173 = vpack.c.b16 %v2157, %v2157
  %v2174 = vpack.c.b16 %v2158, %v2158
  %v2175 = vpack.c.b16 %v2159, %v2159
  %2192 = vst [vmem:[%s3] sm:$0xf] %v2160
  %2193 = vst [vmem:[%s3 + $0x4] sm:$0xf] %v2161
  %2194 = vst [vmem:[%s3 + $0x8] sm:$0xf] %v2162
  %2195 = vst [vmem:[%s3 + $0xc] sm:$0xf] %v2163
  %2196 = vst [vmem:[%s3 + $0x10] sm:$0xf] %v2164
  %2197 = vst [vmem:[%s3 + $0x14] sm:$0xf] %v2165
  %2198 = vst [vmem:[%s3 + $0x18] sm:$0xf] %v2166
  %2199 = vst [vmem:[%s3 + $0x1c] sm:$0xf] %v2167
  %2200 = vst [vmem:[%s3 + $0x20] sm:$0xf] %v2168
  %2201 = vst [vmem:[%s3 + $0x24] sm:$0xf] %v2169
  %2202 = vst [vmem:[%s3 + $0x28] sm:$0xf] %v2170
  %2203 = vst [vmem:[%s3 + $0x2c] sm:$0xf] %v2171
  %2204 = vst [vmem:[%s3 + $0x30] sm:$0xf] %v2172
  %2205 = vst [vmem:[%s3 + $0x34] sm:$0xf] %v2173
  %2206 = vst [vmem:[%s3 + $0x38] sm:$0xf] %v2174
  %2207 = vst [vmem:[%s3 + $0x3c] sm:$0xf] %v2175
  %v2208 = vmin.f32 %v1812, %v1828
  %v2209 = vmin.f32 %v1813, %v1829
  %v2210 = vmin.f32 %v1814, %v1830
  %v2211 = vmin.f32 %v1815, %v1831
  %v2212 = vmin.f32 %v1816, %v1832
  %v2213 = vmin.f32 %v1817, %v1833
  %v2214 = vmin.f32 %v1818, %v1834
  %v2215 = vmin.f32 %v1819, %v1835
  %v2216 = vmin.f32 %v1820, %v1836
  %v2217 = vmin.f32 %v1821, %v1837
  %v2218 = vmin.f32 %v1822, %v1838
  %v2219 = vmin.f32 %v1823, %v1839
  %v2220 = vmin.f32 %v1824, %v1840
  %v2221 = vmin.f32 %v1825, %v1841
  %v2222 = vmin.f32 %v1826, %v1842
  %v2223 = vmin.f32 %v1827, %v1843
  %v2224 = vmin.f32 %v1844, %v1860
  %v2225 = vmin.f32 %v1845, %v1861
  %v2226 = vmin.f32 %v1846, %v1862
  %v2227 = vmin.f32 %v1847, %v1863
  %v2228 = vmin.f32 %v1848, %v1864
  %v2229 = vmin.f32 %v1849, %v1865
  %v2230 = vmin.f32 %v1850, %v1866
  %v2231 = vmin.f32 %v1851, %v1867
  %v2232 = vmin.f32 %v1852, %v1868
  %v2233 = vmin.f32 %v1853, %v1869
  %v2234 = vmin.f32 %v1854, %v1870
  %v2235 = vmin.f32 %v1855, %v1871
  %v2236 = vmin.f32 %v1856, %v1872
  %v2237 = vmin.f32 %v1857, %v1873
  %v2238 = vmin.f32 %v1858, %v1874
  %v2239 = vmin.f32 %v1859, %v1875
  %v2240 = vmin.f32 %v2208, %v2224
  %v2241 = vmin.f32 %v2209, %v2225
  %v2242 = vmin.f32 %v2210, %v2226
  %v2243 = vmin.f32 %v2211, %v2227
  %v2244 = vmin.f32 %v2212, %v2228
  %v2245 = vmin.f32 %v2213, %v2229
  %v2246 = vmin.f32 %v2214, %v2230
  %v2247 = vmin.f32 %v2215, %v2231
  %v2248 = vmin.f32 %v2216, %v2232
  %v2249 = vmin.f32 %v2217, %v2233
  %v2250 = vmin.f32 %v2218, %v2234
  %v2251 = vmin.f32 %v2219, %v2235
  %v2252 = vmin.f32 %v2220, %v2236
  %v2253 = vmin.f32 %v2221, %v2237
  %v2254 = vmin.f32 %v2222, %v2238
  %v2255 = vmin.f32 %v2223, %v2239
  %v2256 = vpack.c.bf16 %v2241, %v2240
  %v2257 = vpack.c.bf16 %v2243, %v2242
  %v2258 = vpack.c.bf16 %v2245, %v2244
  %v2259 = vpack.c.bf16 %v2247, %v2246
  %v2260 = vpack.c.bf16 %v2249, %v2248
  %v2261 = vpack.c.bf16 %v2251, %v2250
  %v2262 = vpack.c.bf16 %v2253, %v2252
  %v2263 = vpack.c.bf16 %v2255, %v2254
  %v2272 = vunpack.c.l.b16 %v2256
  %v2273 = vunpack.c.h.b16 %v2256
  %v2274 = vunpack.c.l.b16 %v2257
  %v2275 = vunpack.c.h.b16 %v2257
  %v2276 = vunpack.c.l.b16 %v2258
  %v2277 = vunpack.c.h.b16 %v2258
  %v2278 = vunpack.c.l.b16 %v2259
  %v2279 = vunpack.c.h.b16 %v2259
  %v2280 = vunpack.c.l.b16 %v2260
  %v2281 = vunpack.c.h.b16 %v2260
  %v2282 = vunpack.c.l.b16 %v2261
  %v2283 = vunpack.c.h.b16 %v2261
  %v2284 = vunpack.c.l.b16 %v2262
  %v2285 = vunpack.c.h.b16 %v2262
  %v2286 = vunpack.c.l.b16 %v2263
  %v2287 = vunpack.c.h.b16 %v2263
  %v2288 = vpack.c.b16 %v2272, %v2272
  %v2289 = vpack.c.b16 %v2273, %v2273
  %v2290 = vpack.c.b16 %v2274, %v2274
  %v2291 = vpack.c.b16 %v2275, %v2275
  %v2292 = vpack.c.b16 %v2276, %v2276
  %v2293 = vpack.c.b16 %v2277, %v2277
  %v2294 = vpack.c.b16 %v2278, %v2278
  %v2295 = vpack.c.b16 %v2279, %v2279
  %v2296 = vpack.c.b16 %v2280, %v2280
  %v2297 = vpack.c.b16 %v2281, %v2281
  %v2298 = vpack.c.b16 %v2282, %v2282
  %v2299 = vpack.c.b16 %v2283, %v2283
  %v2300 = vpack.c.b16 %v2284, %v2284
  %v2301 = vpack.c.b16 %v2285, %v2285
  %v2302 = vpack.c.b16 %v2286, %v2286
  %v2303 = vpack.c.b16 %v2287, %v2287
  %2320 = vst [vmem:[%s4] sm:$0xf] %v2288
  %2321 = vst [vmem:[%s4 + $0x4] sm:$0xf] %v2289
  %2322 = vst [vmem:[%s4 + $0x8] sm:$0xf] %v2290
  %2323 = vst [vmem:[%s4 + $0xc] sm:$0xf] %v2291
  %2324 = vst [vmem:[%s4 + $0x10] sm:$0xf] %v2292
  %2325 = vst [vmem:[%s4 + $0x14] sm:$0xf] %v2293
  %2326 = vst [vmem:[%s4 + $0x18] sm:$0xf] %v2294
  %2327 = vst [vmem:[%s4 + $0x1c] sm:$0xf] %v2295
  %2328 = vst [vmem:[%s4 + $0x20] sm:$0xf] %v2296
  %2329 = vst [vmem:[%s4 + $0x24] sm:$0xf] %v2297
  %2330 = vst [vmem:[%s4 + $0x28] sm:$0xf] %v2298
  %2331 = vst [vmem:[%s4 + $0x2c] sm:$0xf] %v2299
  %2332 = vst [vmem:[%s4 + $0x30] sm:$0xf] %v2300
  %2333 = vst [vmem:[%s4 + $0x34] sm:$0xf] %v2301
  %2334 = vst [vmem:[%s4 + $0x38] sm:$0xf] %v2302
  %2335 = vst [vmem:[%s4 + $0x3c] sm:$0xf] %v2303
  // Predicated region
  $region14: #{conv_block_forward.2} parent=0 // pred_check
    _
  $region15: #{conv_block_forward.2} parent=0 // pred_check_branch
    %2337 = sbr.rel (0) target = $region17
  $region16: #{conv_block_forward.2} parent=0 // pred_region
    _
  $region17: #{conv_block_forward.2} parent=0 // pred_fallthru
    _
  // Predicated region
  $region18: #{conv_block_forward.2} parent=0 // pred_check
    _
  $region19: #{conv_block_forward.2} parent=0 // pred_check_branch
    %2339 = sbr.rel (0) target = $region21
  $region20: #{conv_block_forward.2} parent=0 // pred_region
    _
  $region21: #{conv_block_forward.2} parent=0 // pred_fallthru
    _
  // Predicated region
  $region22: #{conv_block_forward.2} parent=0 // pred_check
    _
  $region23: #{conv_block_forward.2} parent=0 // pred_check_branch
    %2341 = sbr.rel (0) target = $region25
  $region24: #{conv_block_forward.2} parent=0 // pred_region
    _
  $region25: #{conv_block_forward.2} parent=0 // pred_fallthru
    _
  // Predicated region
  $region26: #{conv_block_forward.2} parent=0 // pred_check
    _
  $region27: #{conv_block_forward.2} parent=0 // pred_check_branch
    %2343 = sbr.rel (0) target = $region29
  $region28: #{conv_block_forward.2} parent=0 // pred_region
    _
  $region29: #{conv_block_forward.2} parent=0 // pred_fallthru
    _
  // Predicated region
  $region30: #{conv_block_forward.2} parent=0 // pred_check
    _
  $region31: #{conv_block_forward.2} parent=0 // pred_check_branch
    %2345 = sbr.rel (0) target = $region33
  $region32: #{conv_block_forward.2} parent=0 // pred_region
    _
  $region33: #{conv_block_forward.2} parent=0 // pred_fallthru
    _
  // Predicated region
  $region34: #{conv_block_forward.2} parent=0 // pred_check
    _
  $region35: #{conv_block_forward.2} parent=0 // pred_check_branch
    %2347 = sbr.rel (0) target = $region37
  $region36: #{conv_block_forward.2} parent=0 // pred_region
    _
  $region37: #{conv_block_forward.2} parent=0 // pred_fallthru
    _
  // Predicated region
  $region38: #{conv_block_forward.2} parent=0 // pred_check
    _
  $region39: #{conv_block_forward.2} parent=0 // pred_check_branch
    %2349 = sbr.rel (0) target = $region41
  $region40: #{conv_block_forward.2} parent=0 // pred_region
    _
  $region41: #{conv_block_forward.2} parent=0 // pred_fallthru
    _
  // Predicated region
  $region42: #{conv_block_forward.2} parent=0 // pred_check
    _
  $region43: #{conv_block_forward.2} parent=0 // pred_check_branch
    %2351 = sbr.rel (0) target = $region45
  $region44: #{conv_block_forward.2} parent=0 // pred_region
    _
  $region45: #{conv_block_forward.2} parent=0 // pred_fallthru
    _

</llo_original>
